<compile_context>
chip_gen: v7x
topology: tpu7x:2x2x1
jax: 0.10.0
libtpu: 0.0.40
codegen_flags: <defaults>
</compile_context>

<pallas_src>
import functools

import jax
import jax.numpy as jnp
import numpy as np
from jax.experimental import pallas as pl
from jax.experimental.pallas import tpu as pltpu


def residual_block_kernel(x_ref, w1_ref, w2_ref, sel_ref, selt_ref,
                          g1_ref, b1_ref, g2_ref, b2_ref, o_ref,
                          *, H, b_tile, inv_hw, eps, mxu_dtype):
    # Per-grid-step views:
    #   x_ref   : (TM, Lp)      TM = b_tile*H rows, Lp = P*W*C lanes (f32)
    #   w*_ref  : (3, Lp, Lp)   banded conv weights per vertical tap (mxu_dtype)
    #   sel_ref : (Lp, P*C)     lane -> (sample-in-pair, channel) reducer (f32)
    #   selt_ref: (P*C, Lp)     its transpose (broadcast back to lanes)
    #   g*_ref  : (1, P*C)      gamma tiled over the packed samples
    #   b*_ref  : (1, Lp)       beta pre-broadcast to lanes
    #   o_ref   : (TM, Lp)      f32 output
    f32 = jnp.float32
    TM, Lp = x_ref.shape

    x = x_ref[...]                       # f32, also the residual
    sel = sel_ref[...]
    selt = selt_ref[...]

    # Boundary-row masks for the rolled vertical taps (also kill the seams
    # between the b_tile images stacked along M).
    row = jax.lax.broadcasted_iota(jnp.int32, (TM, Lp), 0) % H
    not_first = row != 0
    not_last = row != H - 1

    def conv3x3(h, w_ref):
        # h: (TM, Lp) in mxu_dtype.  Horizontal taps + W zero-padding are
        # folded into the bands; vertical taps are one-sublane rolls of the
        # per-ky matmul results (roll commutes with the weight matmul).
        t0 = jnp.dot(h, w_ref[0], preferred_element_type=f32)
        t1 = jnp.dot(h, w_ref[1], preferred_element_type=f32)
        t2 = jnp.dot(h, w_ref[2], preferred_element_type=f32)
        down = jnp.where(not_first, pltpu.roll(t0, shift=1, axis=0), 0.0)
        up = jnp.where(not_last, pltpu.roll(t2, shift=TM - 1, axis=0), 0.0)
        return t1 + down + up            # (TM, Lp) f32

    def inst_norm(acc, gamma, beta_lane, *, relu):
        # Two-pass per-(sample, channel) statistics over H*W, fully in f32.
        acc3 = acc.reshape(b_tile, H, Lp)
        gsum = jnp.sum(acc3, axis=1)                                   # (b, Lp)
        mean_c = jnp.dot(gsum, sel, preferred_element_type=f32) * inv_hw
        mean_l = jnp.dot(mean_c, selt, preferred_element_type=f32)     # (b, Lp)
        cent = acc3 - mean_l[:, None, :]
        vsum = jnp.sum(cent * cent, axis=1)                            # (b, Lp)
        var_c = jnp.dot(vsum, sel, preferred_element_type=f32) * inv_hw
        scale_c = gamma * jax.lax.rsqrt(var_c + eps)                   # (b, PC)
        scale_l = jnp.dot(scale_c, selt, preferred_element_type=f32)   # (b, Lp)
        h = cent * scale_l[:, None, :] + beta_lane
        if relu:
            h = jnp.maximum(h, 0.0)
        return h.reshape(TM, Lp)

    h1 = inst_norm(conv3x3(x.astype(mxu_dtype), w1_ref),
                   g1_ref[...], b1_ref[...], relu=True)
    h2 = inst_norm(conv3x3(h1.astype(mxu_dtype), w2_ref),
                   g2_ref[...], b2_ref[...], relu=False)
    o_ref[...] = (x + h2).astype(o_ref.dtype)


def _banded_conv_weight(w_oihw, W):
    """OIHW 3x3 conv weight -> (3, W*Cin, W*Cout) banded matrices (per ky).

    band[ky][xi*Cin+ci, xo*Cout+co] = w[co, ci, ky, xi-xo+1] when xi-xo+1 is
    in {0,1,2}, else 0: horizontal taps and the zero-padding along W are
    folded into the matmul K axis.
    """
    Cout, Cin, KH, KW = w_oihw.shape
    assert KH == 3 and KW == 3
    m = np.zeros((3, W, W), np.float32)
    for kx in range(3):
        for xo in range(W):
            xi = xo + kx - 1
            if 0 <= xi < W:
                m[kx, xi, xo] = 1.0
    b5 = jnp.einsum('ocyk,kab->yacbo', w_oihw.astype(jnp.float32),
                    jnp.asarray(m))                     # (3, W, Cin, W, Cout)
    return b5.reshape(3, W * Cin, W * Cout)


def residual_block(x_nchw, w1_oihw, g1, b1, w2_oihw, g2, b2, *,
                   eps=1e-5, mxu_dtype=jnp.bfloat16):
    """ResidualBlock forward. Inputs use PyTorch conventions (NCHW / OIHW)."""
    N, Cin, H, W = x_nchw.shape
    C = w1_oihw.shape[0]
    assert Cin == C and w2_oihw.shape[0] == C, "requires dim_in == dim_out"
    assert H % 8 == 0, "H must be a multiple of 8 (sublane tiling)"

    WC = W * C
    # Lane packing: P samples side-by-side so the lane axis is >= 128.
    P = 2 if (N % 2 == 0 and WC < 128) else 1
    Lp = P * WC
    G = N // P                                  # image groups left for M

    # Stack as many image groups as possible into the MXU M dim (~512 rows).
    b_tile = 1
    for d in range(1, G + 1):
        if G % d == 0 and d * H <= 512:
            b_tile = d
    TM = b_tile * H
    steps = G // b_tile
    grid = (steps,)

    # NCHW -> lane-dense (G*H, P*W*C); kept f32 (it is also the residual).
    xs = jnp.transpose(x_nchw, (0, 2, 3, 1)).reshape(G, P, H, WC)
    x_k = jnp.transpose(xs, (0, 2, 1, 3)).reshape(G * H, Lp).astype(jnp.float32)

    eye_p = jnp.eye(P, dtype=jnp.float32)

    def pack_band(w):
        band = _banded_conv_weight(w, W)                     # (3, WC, WC)
        if P > 1:                                            # block-diagonal:
            band = jnp.stack([jnp.kron(eye_p, band[k])       # packed samples
                              for k in range(3)])            # never mix
        return band.astype(mxu_dtype)                        # (3, Lp, Lp)

    w1_k = pack_band(w1_oihw)
    w2_k = pack_band(w2_oihw)

    # Lane <-> (sample-in-pair, channel) selectors; kept f32 so the whole
    # InstanceNorm statistics path stays f32.
    sel = jnp.tile(jnp.eye(C, dtype=jnp.float32), (W, 1))    # (WC, C)
    selt = jnp.tile(jnp.eye(C, dtype=jnp.float32), (1, W))   # (C, WC)
    if P > 1:
        sel = jnp.kron(eye_p, sel)                           # (Lp, P*C)
        selt = jnp.kron(eye_p, selt)                         # (P*C, Lp)
    PC = P * C

    g1_k = jnp.tile(g1.reshape(1, C).astype(jnp.float32), (1, P))       # (1,PC)
    g2_k = jnp.tile(g2.reshape(1, C).astype(jnp.float32), (1, P))
    b1_k = jnp.tile(b1.reshape(1, C).astype(jnp.float32), (1, P * W))   # (1,Lp)
    b2_k = jnp.tile(b2.reshape(1, C).astype(jnp.float32), (1, P * W))

    kernel = functools.partial(
        residual_block_kernel, H=H, b_tile=b_tile, inv_hw=1.0 / (H * W),
        eps=eps, mxu_dtype=mxu_dtype)

    itemsize = np.dtype(mxu_dtype).itemsize
    flops = steps * 6 * 2 * TM * Lp * Lp                  # 2 convs x 3 taps
    bytes_accessed = (2 * 4 * G * H * Lp                   # x in + out (f32)
                      + 2 * 3 * Lp * Lp * itemsize         # banded weights
                      + 2 * Lp * PC * 4 + 4 * Lp * 4)      # selectors, affine
    transcendentals = 2 * G * P * C                        # rsqrt per (n, c)

    out = pl.pallas_call(
        kernel,
        out_shape=jax.ShapeDtypeStruct((G * H, Lp), jnp.float32),
        grid_spec=pltpu.PrefetchScalarGridSpec(
            num_scalar_prefetch=0,
            grid=grid,
            in_specs=[
                pl.BlockSpec((TM, Lp), lambda i: (i, 0)),
                # Grid-invariant operands below (constant index_map).
                pl.BlockSpec((3, Lp, Lp), lambda i: (0, 0, 0)),
                pl.BlockSpec((3, Lp, Lp), lambda i: (0, 0, 0)),
                pl.BlockSpec((Lp, PC), lambda i: (0, 0)),
                pl.BlockSpec((PC, Lp), lambda i: (0, 0)),
                pl.BlockSpec((1, PC), lambda i: (0, 0)),
                pl.BlockSpec((1, Lp), lambda i: (0, 0)),
                pl.BlockSpec((1, PC), lambda i: (0, 0)),
                pl.BlockSpec((1, Lp), lambda i: (0, 0)),
            ],
            out_specs=pl.BlockSpec((TM, Lp), lambda i: (i, 0)),
        ),
        compiler_params=pltpu.CompilerParams(
            dimension_semantics=("parallel",),
            vmem_limit_bytes=64 * 1024 * 1024),
        cost_estimate=pl.CostEstimate(flops=int(flops),
                                      transcendentals=int(transcendentals),
                                      bytes_accessed=int(bytes_accessed)),
    )(x_k, w1_k, w2_k, sel, selt, g1_k, b1_k, g2_k, b2_k)

    # Lane-dense (G*H, P*W*C) -> NCHW.
    out = out.reshape(G, H, P, W, C)
    out = jnp.transpose(out, (0, 2, 4, 1, 3)).reshape(N, C, H, W)
    return out


def residual_block_reference(x, w1, g1, b1, w2, g2, b2, eps=1e-5):
    """Pure-JAX reference matching PyTorch semantics (NCHW / OIHW)."""
    def conv(h, w):
        return jax.lax.conv_general_dilated(
            h, w, window_strides=(1, 1), padding=((1, 1), (1, 1)),
            dimension_numbers=("NCHW", "OIHW", "NCHW"))

    def inorm(h, g, b):
        mean = h.mean(axis=(2, 3), keepdims=True)
        var = ((h - mean) ** 2).mean(axis=(2, 3), keepdims=True)
        return (h - mean) * jax.lax.rsqrt(var + eps) * g.reshape(1, -1, 1, 1) \
            + b.reshape(1, -1, 1, 1)

    h = jnp.maximum(inorm(conv(x, w1), g1, b1), 0.0)
    h = inorm(conv(h, w2), g2, b2)
    return x + h


if __name__ == "__main__":
    # Small shapes consistent with the module: dim_in == dim_out.
    N, C, H, W = 2, 4, 16, 16

    key = jax.random.PRNGKey(0)
    kx, kw1, kw2, kg1, kb1, kg2, kb2 = jax.random.split(key, 7)

    x = jax.random.normal(kx, (N, C, H, W), dtype=jnp.float32)
    # Conv weights in PyTorch OIHW layout (bias=False).
    w1 = jax.random.normal(kw1, (C, C, 3, 3), dtype=jnp.float32) * 0.2
    w2 = jax.random.normal(kw2, (C, C, 3, 3), dtype=jnp.float32) * 0.2
    # InstanceNorm affine params (deterministic, non-trivial).
    g1 = 1.0 + 0.1 * jax.random.normal(kg1, (C,), dtype=jnp.float32)
    b1 = 0.1 * jax.random.normal(kb1, (C,), dtype=jnp.float32)
    g2 = 1.0 + 0.1 * jax.random.normal(kg2, (C,), dtype=jnp.float32)
    b2 = 0.1 * jax.random.normal(kb2, (C,), dtype=jnp.float32)

    ref = jax.block_until_ready(
        residual_block_reference(x, w1, g1, b1, w2, g2, b2))

    # f32-MXU path: validates the banded-matmul + roll + two-pass-IN algorithm
    # against the PyTorch-semantics reference at tight tolerance.
    out_f32 = jax.block_until_ready(
        residual_block(x, w1, g1, b1, w2, g2, b2, mxu_dtype=jnp.float32))
    np.testing.assert_allclose(np.asarray(out_f32), np.asarray(ref),
                               rtol=2e-3, atol=2e-3)

    # Default bf16-MXU fast path (f32 accumulation, f32 InstanceNorm stats);
    # tolerance sized for bf16 operand rounding through two conv+IN stages.
    out = jax.block_until_ready(residual_block(x, w1, g1, b1, w2, g2, b2))
    np.testing.assert_allclose(np.asarray(out), np.asarray(ref),
                               rtol=1e-2, atol=2e-2)

    print("KERNEL_OK")
</pallas_src>

<mosaic_0001>
module attributes {stable_mosaic.version = 11 : i64} {
  func.func @residual_block_kernel(%arg0: i32, %arg1: memref<16x128xf32, #tpu.memory_space<vmem>>, %arg2: memref<3x128x128xf32, #tpu.memory_space<vmem>>, %arg3: memref<3x128x128xf32, #tpu.memory_space<vmem>>, %arg4: memref<128x8xf32, #tpu.memory_space<vmem>>, %arg5: memref<8x128xf32, #tpu.memory_space<vmem>>, %arg6: memref<1x8xf32, #tpu.memory_space<vmem>>, %arg7: memref<1x128xf32, #tpu.memory_space<vmem>>, %arg8: memref<1x8xf32, #tpu.memory_space<vmem>>, %arg9: memref<1x128xf32, #tpu.memory_space<vmem>>, %arg10: memref<16x128xf32, #tpu.memory_space<vmem>>) attributes {dimension_semantics = [#tpu.dimension_semantics<parallel>], iteration_bounds = array<i64: 1>, scalar_prefetch = 0 : i64, scratch_operands = 0 : i64, tpu.core_type = #tpu.core_type<tc>, window_params = [{transform_indices = @transform_0, window_bounds = array<i64: 16, 128>}, {pipeline_mode = #tpu.pipeline_mode<synchronous>, transform_indices = @transform_1, window_bounds = array<i64: 3, 128, 128>}, {pipeline_mode = #tpu.pipeline_mode<synchronous>, transform_indices = @transform_2, window_bounds = array<i64: 3, 128, 128>}, {pipeline_mode = #tpu.pipeline_mode<synchronous>, transform_indices = @transform_3, window_bounds = array<i64: 128, 8>}, {pipeline_mode = #tpu.pipeline_mode<synchronous>, transform_indices = @transform_4, window_bounds = array<i64: 8, 128>}, {pipeline_mode = #tpu.pipeline_mode<synchronous>, transform_indices = @transform_5, window_bounds = array<i64: 1, 8>}, {pipeline_mode = #tpu.pipeline_mode<synchronous>, transform_indices = @transform_6, window_bounds = array<i64: 1, 128>}, {pipeline_mode = #tpu.pipeline_mode<synchronous>, transform_indices = @transform_7, window_bounds = array<i64: 1, 8>}, {pipeline_mode = #tpu.pipeline_mode<synchronous>, transform_indices = @transform_8, window_bounds = array<i64: 1, 128>}, {transform_indices = @transform_9, window_bounds = array<i64: 16, 128>}]} {
    %c0 = arith.constant 0 : index
    %c0_0 = arith.constant 0 : index
    %0 = vector.load %arg1[%c0, %c0_0] : memref<16x128xf32, #tpu.memory_space<vmem>>, vector<16x128xf32>
    %c0_1 = arith.constant 0 : index
    %c0_2 = arith.constant 0 : index
    %1 = vector.load %arg4[%c0_1, %c0_2] : memref<128x8xf32, #tpu.memory_space<vmem>>, vector<128x8xf32>
    %c0_3 = arith.constant 0 : index
    %c0_4 = arith.constant 0 : index
    %2 = vector.load %arg5[%c0_3, %c0_4] : memref<8x128xf32, #tpu.memory_space<vmem>>, vector<8x128xf32>
    %3 = tpu.iota {dimensions = array<i32: 0>} : vector<16x128xi32>
    %c16_i32 = arith.constant 16 : i32
    %c0_i32 = arith.constant 0 : i32
    %4 = arith.cmpi eq, %c16_i32, %c0_i32 : i32
    %c1_i32 = arith.constant 1 : i32
    %5 = arith.select %4, %c1_i32, %c16_i32 : i32
    %6 = vector.broadcast %5 : i32 to vector<16x128xi32>
    %7 = arith.remsi %3, %6 : vector<16x128xi32>
    %c0_i32_5 = arith.constant 0 : i32
    %8 = vector.broadcast %c0_i32_5 : i32 to vector<16x128xi32>
    %9 = arith.cmpi ne, %7, %8 : vector<16x128xi32>
    %c0_i32_6 = arith.constant 0 : i32
    %10 = vector.broadcast %c0_i32_6 : i32 to vector<16x128xi32>
    %11 = arith.cmpi slt, %7, %10 : vector<16x128xi32>
    %c0_i32_7 = arith.constant 0 : i32
    %12 = arith.cmpi slt, %5, %c0_i32_7 : i32
    %13 = vector.broadcast %12 : i1 to vector<16x128xi1>
    %14 = vector.broadcast %13 : vector<16x128xi1> to vector<16x128xi1>
    %15 = arith.xori %11, %14 : vector<16x128xi1>
    %16 = arith.andi %15, %9 : vector<16x128xi1>
    %17 = vector.broadcast %5 : i32 to vector<16x128xi32>
    %18 = arith.addi %7, %17 : vector<16x128xi32>
    %19 = arith.select %16, %18, %7 : vector<16x128xi1>, vector<16x128xi32>
    %c0_i32_8 = arith.constant 0 : i32
    %20 = vector.broadcast %c0_i32_8 : i32 to vector<16x128xi32>
    %21 = arith.cmpi ne, %19, %20 : vector<16x128xi32>
    %c15_i32 = arith.constant 15 : i32
    %22 = vector.broadcast %c15_i32 : i32 to vector<16x128xi32>
    %23 = arith.cmpi ne, %19, %22 : vector<16x128xi32>
    %c0_9 = arith.constant 0 : index
    %c0_10 = arith.constant 0 : index
    %c0_11 = arith.constant 0 : index
    %24 = vector.load %arg2[%c0_9, %c0_10, %c0_11] : memref<3x128x128xf32, #tpu.memory_space<vmem>>, vector<1x128x128xf32>
    %25 = vector.shape_cast %24 : vector<1x128x128xf32> to vector<128x128xf32>
    %cst = arith.constant dense<0.000000e+00> : vector<16x128xf32>
    %26 = tpu.matmul %0, %25, %cst {dimension_numbers = #tpu.dot_dimension_numbers<[1], [0], [0], [1], [0, 0, 1, 1], [], []>} : vector<16x128xf32>, vector<128x128xf32>, vector<16x128xf32> -> vector<16x128xf32>
    %c1 = arith.constant 1 : index
    %c0_12 = arith.constant 0 : index
    %c0_13 = arith.constant 0 : index
    %27 = vector.load %arg2[%c1, %c0_12, %c0_13] : memref<3x128x128xf32, #tpu.memory_space<vmem>>, vector<1x128x128xf32>
    %28 = vector.shape_cast %27 : vector<1x128x128xf32> to vector<128x128xf32>
    %cst_14 = arith.constant dense<0.000000e+00> : vector<16x128xf32>
    %29 = tpu.matmul %0, %28, %cst_14 {dimension_numbers = #tpu.dot_dimension_numbers<[1], [0], [0], [1], [0, 0, 1, 1], [], []>} : vector<16x128xf32>, vector<128x128xf32>, vector<16x128xf32> -> vector<16x128xf32>
    %c2 = arith.constant 2 : index
    %c0_15 = arith.constant 0 : index
    %c0_16 = arith.constant 0 : index
    %30 = vector.load %arg2[%c2, %c0_15, %c0_16] : memref<3x128x128xf32, #tpu.memory_space<vmem>>, vector<1x128x128xf32>
    %31 = vector.shape_cast %30 : vector<1x128x128xf32> to vector<128x128xf32>
    %cst_17 = arith.constant dense<0.000000e+00> : vector<16x128xf32>
    %32 = tpu.matmul %0, %31, %cst_17 {dimension_numbers = #tpu.dot_dimension_numbers<[1], [0], [0], [1], [0, 0, 1, 1], [], []>} : vector<16x128xf32>, vector<128x128xf32>, vector<16x128xf32> -> vector<16x128xf32>
    %c1_i32_18 = arith.constant 1 : i32
    %33 = tpu.dynamic_rotate %26 by %c1_i32_18 dim 0 : vector<16x128xf32>, i32 -> vector<16x128xf32>
    %cst_19 = arith.constant 0.000000e+00 : f32
    %34 = vector.broadcast %cst_19 : f32 to vector<16x128xf32>
    %35 = arith.select %21, %33, %34 : vector<16x128xi1>, vector<16x128xf32>
    %c15_i32_20 = arith.constant 15 : i32
    %36 = tpu.dynamic_rotate %32 by %c15_i32_20 dim 0 : vector<16x128xf32>, i32 -> vector<16x128xf32>
    %cst_21 = arith.constant 0.000000e+00 : f32
    %37 = vector.broadcast %cst_21 : f32 to vector<16x128xf32>
    %38 = arith.select %23, %36, %37 : vector<16x128xi1>, vector<16x128xf32>
    %39 = arith.addf %29, %35 : vector<16x128xf32>
    %40 = arith.addf %39, %38 : vector<16x128xf32>
    %c0_22 = arith.constant 0 : index
    %c0_23 = arith.constant 0 : index
    %41 = vector.load %arg6[%c0_22, %c0_23] : memref<1x8xf32, #tpu.memory_space<vmem>>, vector<1x8xf32>
    %c0_24 = arith.constant 0 : index
    %c0_25 = arith.constant 0 : index
    %42 = vector.load %arg7[%c0_24, %c0_25] : memref<1x128xf32, #tpu.memory_space<vmem>>, vector<1x128xf32>
    %43 = vector.shape_cast %40 : vector<16x128xf32> to vector<1x16x128xf32>
    %cst_26 = arith.constant dense<0.000000e+00> : vector<1x128xf32>
    %44 = vector.multi_reduction <add>, %43, %cst_26 [1] : vector<1x16x128xf32> to vector<1x128xf32>
    %cst_27 = arith.constant dense<0.000000e+00> : vector<1x8xf32>
    %45 = tpu.matmul %44, %1, %cst_27 {dimension_numbers = #tpu.dot_dimension_numbers<[1], [0], [0], [1], [0, 0, 1, 1], [], []>} : vector<1x128xf32>, vector<128x8xf32>, vector<1x8xf32> -> vector<1x8xf32>
    %cst_28 = arith.constant 3.906250e-03 : f32
    %46 = vector.broadcast %cst_28 : f32 to vector<1x8xf32>
    %47 = arith.mulf %45, %46 : vector<1x8xf32>
    %cst_29 = arith.constant dense<0.000000e+00> : vector<1x128xf32>
    %48 = tpu.matmul %47, %2, %cst_29 {dimension_numbers = #tpu.dot_dimension_numbers<[1], [0], [0], [1], [0, 0, 1, 1], [], []>} : vector<1x8xf32>, vector<8x128xf32>, vector<1x128xf32> -> vector<1x128xf32>
    %49 = vector.shape_cast %48 : vector<1x128xf32> to vector<1x1x128xf32>
    %50 = vector.broadcast %49 : vector<1x1x128xf32> to vector<1x16x128xf32>
    %51 = arith.subf %43, %50 : vector<1x16x128xf32>
    %52 = arith.mulf %51, %51 : vector<1x16x128xf32>
    %cst_30 = arith.constant dense<0.000000e+00> : vector<1x128xf32>
    %53 = vector.multi_reduction <add>, %52, %cst_30 [1] : vector<1x16x128xf32> to vector<1x128xf32>
    %cst_31 = arith.constant dense<0.000000e+00> : vector<1x8xf32>
    %54 = tpu.matmul %53, %1, %cst_31 {dimension_numbers = #tpu.dot_dimension_numbers<[1], [0], [0], [1], [0, 0, 1, 1], [], []>} : vector<1x128xf32>, vector<128x8xf32>, vector<1x8xf32> -> vector<1x8xf32>
    %cst_32 = arith.constant 3.906250e-03 : f32
    %55 = vector.broadcast %cst_32 : f32 to vector<1x8xf32>
    %56 = arith.mulf %54, %55 : vector<1x8xf32>
    %cst_33 = arith.constant 9.99999974E-6 : f32
    %57 = vector.broadcast %cst_33 : f32 to vector<1x8xf32>
    %58 = arith.addf %56, %57 : vector<1x8xf32>
    %59 = math.rsqrt %58 : vector<1x8xf32>
    %60 = arith.mulf %41, %59 : vector<1x8xf32>
    %cst_34 = arith.constant dense<0.000000e+00> : vector<1x128xf32>
    %61 = tpu.matmul %60, %2, %cst_34 {dimension_numbers = #tpu.dot_dimension_numbers<[1], [0], [0], [1], [0, 0, 1, 1], [], []>} : vector<1x8xf32>, vector<8x128xf32>, vector<1x128xf32> -> vector<1x128xf32>
    %62 = vector.shape_cast %61 : vector<1x128xf32> to vector<1x1x128xf32>
    %63 = vector.broadcast %62 : vector<1x1x128xf32> to vector<1x16x128xf32>
    %64 = arith.mulf %51, %63 : vector<1x16x128xf32>
    %65 = vector.shape_cast %42 : vector<1x128xf32> to vector<1x1x128xf32>
    %66 = vector.broadcast %65 : vector<1x1x128xf32> to vector<1x16x128xf32>
    %67 = arith.addf %64, %66 : vector<1x16x128xf32>
    %cst_35 = arith.constant 0.000000e+00 : f32
    %68 = vector.broadcast %cst_35 : f32 to vector<1x16x128xf32>
    %69 = arith.maximumf %67, %68 : vector<1x16x128xf32>
    %70 = vector.shape_cast %69 : vector<1x16x128xf32> to vector<16x128xf32>
    %c0_36 = arith.constant 0 : index
    %c0_37 = arith.constant 0 : index
    %c0_38 = arith.constant 0 : index
    %71 = vector.load %arg3[%c0_36, %c0_37, %c0_38] : memref<3x128x128xf32, #tpu.memory_space<vmem>>, vector<1x128x128xf32>
    %72 = vector.shape_cast %71 : vector<1x128x128xf32> to vector<128x128xf32>
    %cst_39 = arith.constant dense<0.000000e+00> : vector<16x128xf32>
    %73 = tpu.matmul %70, %72, %cst_39 {dimension_numbers = #tpu.dot_dimension_numbers<[1], [0], [0], [1], [0, 0, 1, 1], [], []>} : vector<16x128xf32>, vector<128x128xf32>, vector<16x128xf32> -> vector<16x128xf32>
    %c1_40 = arith.constant 1 : index
    %c0_41 = arith.constant 0 : index
    %c0_42 = arith.constant 0 : index
    %74 = vector.load %arg3[%c1_40, %c0_41, %c0_42] : memref<3x128x128xf32, #tpu.memory_space<vmem>>, vector<1x128x128xf32>
    %75 = vector.shape_cast %74 : vector<1x128x128xf32> to vector<128x128xf32>
    %cst_43 = arith.constant dense<0.000000e+00> : vector<16x128xf32>
    %76 = tpu.matmul %70, %75, %cst_43 {dimension_numbers = #tpu.dot_dimension_numbers<[1], [0], [0], [1], [0, 0, 1, 1], [], []>} : vector<16x128xf32>, vector<128x128xf32>, vector<16x128xf32> -> vector<16x128xf32>
    %c2_44 = arith.constant 2 : index
    %c0_45 = arith.constant 0 : index
    %c0_46 = arith.constant 0 : index
    %77 = vector.load %arg3[%c2_44, %c0_45, %c0_46] : memref<3x128x128xf32, #tpu.memory_space<vmem>>, vector<1x128x128xf32>
    %78 = vector.shape_cast %77 : vector<1x128x128xf32> to vector<128x128xf32>
    %cst_47 = arith.constant dense<0.000000e+00> : vector<16x128xf32>
    %79 = tpu.matmul %70, %78, %cst_47 {dimension_numbers = #tpu.dot_dimension_numbers<[1], [0], [0], [1], [0, 0, 1, 1], [], []>} : vector<16x128xf32>, vector<128x128xf32>, vector<16x128xf32> -> vector<16x128xf32>
    %c1_i32_48 = arith.constant 1 : i32
    %80 = tpu.dynamic_rotate %73 by %c1_i32_48 dim 0 : vector<16x128xf32>, i32 -> vector<16x128xf32>
    %cst_49 = arith.constant 0.000000e+00 : f32
    %81 = vector.broadcast %cst_49 : f32 to vector<16x128xf32>
    %82 = arith.select %21, %80, %81 : vector<16x128xi1>, vector<16x128xf32>
    %c15_i32_50 = arith.constant 15 : i32
    %83 = tpu.dynamic_rotate %79 by %c15_i32_50 dim 0 : vector<16x128xf32>, i32 -> vector<16x128xf32>
    %cst_51 = arith.constant 0.000000e+00 : f32
    %84 = vector.broadcast %cst_51 : f32 to vector<16x128xf32>
    %85 = arith.select %23, %83, %84 : vector<16x128xi1>, vector<16x128xf32>
    %86 = arith.addf %76, %82 : vector<16x128xf32>
    %87 = arith.addf %86, %85 : vector<16x128xf32>
    %c0_52 = arith.constant 0 : index
    %c0_53 = arith.constant 0 : index
    %88 = vector.load %arg8[%c0_52, %c0_53] : memref<1x8xf32, #tpu.memory_space<vmem>>, vector<1x8xf32>
    %c0_54 = arith.constant 0 : index
    %c0_55 = arith.constant 0 : index
    %89 = vector.load %arg9[%c0_54, %c0_55] : memref<1x128xf32, #tpu.memory_space<vmem>>, vector<1x128xf32>
    %90 = vector.shape_cast %87 : vector<16x128xf32> to vector<1x16x128xf32>
    %cst_56 = arith.constant dense<0.000000e+00> : vector<1x128xf32>
    %91 = vector.multi_reduction <add>, %90, %cst_56 [1] : vector<1x16x128xf32> to vector<1x128xf32>
    %cst_57 = arith.constant dense<0.000000e+00> : vector<1x8xf32>
    %92 = tpu.matmul %91, %1, %cst_57 {dimension_numbers = #tpu.dot_dimension_numbers<[1], [0], [0], [1], [0, 0, 1, 1], [], []>} : vector<1x128xf32>, vector<128x8xf32>, vector<1x8xf32> -> vector<1x8xf32>
    %cst_58 = arith.constant 3.906250e-03 : f32
    %93 = vector.broadcast %cst_58 : f32 to vector<1x8xf32>
    %94 = arith.mulf %92, %93 : vector<1x8xf32>
    %cst_59 = arith.constant dense<0.000000e+00> : vector<1x128xf32>
    %95 = tpu.matmul %94, %2, %cst_59 {dimension_numbers = #tpu.dot_dimension_numbers<[1], [0], [0], [1], [0, 0, 1, 1], [], []>} : vector<1x8xf32>, vector<8x128xf32>, vector<1x128xf32> -> vector<1x128xf32>
    %96 = vector.shape_cast %95 : vector<1x128xf32> to vector<1x1x128xf32>
    %97 = vector.broadcast %96 : vector<1x1x128xf32> to vector<1x16x128xf32>
    %98 = arith.subf %90, %97 : vector<1x16x128xf32>
    %99 = arith.mulf %98, %98 : vector<1x16x128xf32>
    %cst_60 = arith.constant dense<0.000000e+00> : vector<1x128xf32>
    %100 = vector.multi_reduction <add>, %99, %cst_60 [1] : vector<1x16x128xf32> to vector<1x128xf32>
    %cst_61 = arith.constant dense<0.000000e+00> : vector<1x8xf32>
    %101 = tpu.matmul %100, %1, %cst_61 {dimension_numbers = #tpu.dot_dimension_numbers<[1], [0], [0], [1], [0, 0, 1, 1], [], []>} : vector<1x128xf32>, vector<128x8xf32>, vector<1x8xf32> -> vector<1x8xf32>
    %cst_62 = arith.constant 3.906250e-03 : f32
    %102 = vector.broadcast %cst_62 : f32 to vector<1x8xf32>
    %103 = arith.mulf %101, %102 : vector<1x8xf32>
    %cst_63 = arith.constant 9.99999974E-6 : f32
    %104 = vector.broadcast %cst_63 : f32 to vector<1x8xf32>
    %105 = arith.addf %103, %104 : vector<1x8xf32>
    %106 = math.rsqrt %105 : vector<1x8xf32>
    %107 = arith.mulf %88, %106 : vector<1x8xf32>
    %cst_64 = arith.constant dense<0.000000e+00> : vector<1x128xf32>
    %108 = tpu.matmul %107, %2, %cst_64 {dimension_numbers = #tpu.dot_dimension_numbers<[1], [0], [0], [1], [0, 0, 1, 1], [], []>} : vector<1x8xf32>, vector<8x128xf32>, vector<1x128xf32> -> vector<1x128xf32>
    %109 = vector.shape_cast %108 : vector<1x128xf32> to vector<1x1x128xf32>
    %110 = vector.broadcast %109 : vector<1x1x128xf32> to vector<1x16x128xf32>
    %111 = arith.mulf %98, %110 : vector<1x16x128xf32>
    %112 = vector.shape_cast %89 : vector<1x128xf32> to vector<1x1x128xf32>
    %113 = vector.broadcast %112 : vector<1x1x128xf32> to vector<1x16x128xf32>
    %114 = arith.addf %111, %113 : vector<1x16x128xf32>
    %115 = vector.shape_cast %114 : vector<1x16x128xf32> to vector<16x128xf32>
    %116 = arith.addf %0, %115 : vector<16x128xf32>
    %c0_65 = arith.constant 0 : index
    %c0_66 = arith.constant 0 : index
    %117 = vector.load %arg10[%c0_65, %c0_66] : memref<16x128xf32, #tpu.memory_space<vmem>>, vector<16x128xf32>
    tpu.vector_store %arg10[%c0_65, %c0_66], %116 {strides = array<i32>} : memref<16x128xf32, #tpu.memory_space<vmem>>, vector<16x128xf32>,
    return
  }
  func.func @transform_0(%arg0: i32) -> (i32, i32) {
    %c0_i32 = arith.constant 0 : i32
    %c0_i32_0 = arith.constant 0 : i32
    return %arg0, %c0_i32 : i32, i32
  }
  func.func @transform_1(%arg0: i32) -> (i32, i32, i32) {
    %c0_i32 = arith.constant 0 : i32
    %c0_i32_0 = arith.constant 0 : i32
    %c0_i32_1 = arith.constant 0 : i32
    %c0_i32_2 = arith.constant 0 : i32
    return %c0_i32, %c0_i32_0, %c0_i32_1 : i32, i32, i32
  }
  func.func @transform_2(%arg0: i32) -> (i32, i32, i32) {
    %c0_i32 = arith.constant 0 : i32
    %c0_i32_0 = arith.constant 0 : i32
    %c0_i32_1 = arith.constant 0 : i32
    %c0_i32_2 = arith.constant 0 : i32
    return %c0_i32, %c0_i32_0, %c0_i32_1 : i32, i32, i32
  }
  func.func @transform_3(%arg0: i32) -> (i32, i32) {
    %c0_i32 = arith.constant 0 : i32
    %c0_i32_0 = arith.constant 0 : i32
    %c0_i32_1 = arith.constant 0 : i32
    return %c0_i32, %c0_i32_0 : i32, i32
  }
  func.func @transform_4(%arg0: i32) -> (i32, i32) {
    %c0_i32 = arith.constant 0 : i32
    %c0_i32_0 = arith.constant 0 : i32
    %c0_i32_1 = arith.constant 0 : i32
    return %c0_i32, %c0_i32_0 : i32, i32
  }
  func.func @transform_5(%arg0: i32) -> (i32, i32) {
    %c0_i32 = arith.constant 0 : i32
    %c0_i32_0 = arith.constant 0 : i32
    %c0_i32_1 = arith.constant 0 : i32
    return %c0_i32, %c0_i32_0 : i32, i32
  }
  func.func @transform_6(%arg0: i32) -> (i32, i32) {
    %c0_i32 = arith.constant 0 : i32
    %c0_i32_0 = arith.constant 0 : i32
    %c0_i32_1 = arith.constant 0 : i32
    return %c0_i32, %c0_i32_0 : i32, i32
  }
  func.func @transform_7(%arg0: i32) -> (i32, i32) {
    %c0_i32 = arith.constant 0 : i32
    %c0_i32_0 = arith.constant 0 : i32
    %c0_i32_1 = arith.constant 0 : i32
    return %c0_i32, %c0_i32_0 : i32, i32
  }
  func.func @transform_8(%arg0: i32) -> (i32, i32) {
    %c0_i32 = arith.constant 0 : i32
    %c0_i32_0 = arith.constant 0 : i32
    %c0_i32_1 = arith.constant 0 : i32
    return %c0_i32, %c0_i32_0 : i32, i32
  }
  func.func @transform_9(%arg0: i32) -> (i32, i32) {
    %c0_i32 = arith.constant 0 : i32
    %c0_i32_0 = arith.constant 0 : i32
    return %arg0, %c0_i32 : i32, i32
  }
}

</mosaic_0001>

<llo_original>
// kernel: tpu_custom_call.1
$region0: #{tpu_custom_call.1}
  #allocation0 [shape = 'u32[]', space=smem, size = 0x4, offset = 0x4, fixed_abs, tag = 'smem constant byte address 0x4 - core index']
  #allocation1 [shape = 'u32[144,128]{1,0:T(1,128)}', space=vmem, size = 0x12000, scoped, tag = 'internal scratch']
  %s0 = inlined_call_operand.hbm [shape: f32[16,128], index: 0, kind: input, shape index: {}]
  %s1 = inlined_call_operand.hbm [shape: f32[3,128,128], index: 1, kind: input, shape index: {}]
  %s2 = inlined_call_operand.hbm [shape: f32[3,128,128], index: 2, kind: input, shape index: {}]
  %s3 = inlined_call_operand.hbm [shape: f32[128,8], index: 3, kind: input, shape index: {}]
  %s4 = inlined_call_operand.hbm [shape: f32[8,128], index: 4, kind: input, shape index: {}]
  %s5 = inlined_call_operand.hbm [shape: f32[1,8], index: 5, kind: input, shape index: {}]
  %s6 = inlined_call_operand.hbm [shape: f32[1,128], index: 6, kind: input, shape index: {}]
  %s7 = inlined_call_operand.hbm [shape: f32[1,8], index: 7, kind: input, shape index: {}]
  %s8 = inlined_call_operand.hbm [shape: f32[1,128], index: 8, kind: input, shape index: {}]
  %s9 = inlined_call_operand.hbm [shape: f32[16,128], index: 9, kind: output, shape index: {}]
  %s10 = sld [smem:[#allocation0]]
  $region82: #{tpu_custom_call.1} parent=0
    _
  %s12 = ssub.s32 1, %s10
  %s13 = scalar_select 0, %s12, %s10
  $region1: #{tpu_custom_call.1} parent=0
    #allocation2 [shape = 'u8[8192]{0}', space=vmem, size = 0x2000, scoped, tag = 'input window, operand 0, single buffered']
    #allocation3 [shape = 's32[1]{0}', space=sflag, size = 0x4, scoped, tag = 'scoped memory for tpu_custom_call.1']
    #allocation4 [shape = 's32[1]{0}', space=sflag, size = 0x4, scoped, tag = 'scoped memory for tpu_custom_call.1']
    #allocation5 [shape = 'u8[196608]{0}', space=vmem, size = 0x30000, scoped, tag = 'input window, operand 1, single buffered']
    #allocation6 [shape = 's32[1]{0}', space=sflag, size = 0x4, scoped, tag = 'scoped memory for tpu_custom_call.1']
    #allocation7 [shape = 'u8[196608]{0}', space=vmem, size = 0x30000, scoped, tag = 'input window, operand 2, single buffered']
    #allocation8 [shape = 'u8[65536]{0}', space=vmem, size = 0x10000, scoped, tag = 'input window, operand 3, single buffered']
    #allocation9 [shape = 's32[1]{0}', space=sflag, size = 0x4, scoped, tag = 'scoped memory for tpu_custom_call.1']
    #allocation10 [shape = 'u8[4096]{0}', space=vmem, size = 0x1000, scoped, tag = 'input window, operand 4, single buffered']
    #allocation11 [shape = 'u8[512]{0}', space=vmem, size = 0x400, scoped, tag = 'input window, operand 5, single buffered']
    #allocation12 [shape = 's32[1]{0}', space=sflag, size = 0x4, scoped, tag = 'scoped memory for tpu_custom_call.1']
    #allocation13 [shape = 'u8[512]{0}', space=vmem, size = 0x400, scoped, tag = 'input window, operand 6, single buffered']
    #allocation14 [shape = 'u8[512]{0}', space=vmem, size = 0x400, scoped, tag = 'input window, operand 7, single buffered']
    #allocation15 [shape = 's32[1]{0}', space=sflag, size = 0x4, scoped, tag = 'scoped memory for tpu_custom_call.1']
    #allocation16 [shape = 'u8[512]{0}', space=vmem, size = 0x400, scoped, tag = 'input window, operand 8, single buffered']
    #allocation17 [shape = 'u8[8192]{0}', space=vmem, size = 0x2000, scoped, tag = 'output window, operand 0, single buffered']
    %14 = vsyncpa [#allocation3], 0
    %15 = vsyncpa [#allocation6], 0
    %16 = vsyncpa [#allocation9], 0
    %17 = vsyncpa [#allocation12], 0
    %18 = vsyncpa [#allocation15], 0
    %19 = vsyncpa [#allocation4], 0
    // Predicated region
    $region2: #{tpu_custom_call.1} parent=1 // pred_check
      _
    $region3: #{tpu_custom_call.1} parent=1 // pred_check_branch
      %21 = sbr.rel (0) target = $region5
    $region4: #{tpu_custom_call.1} parent=1 // pred_region
      %s23 = ssub.s32 256, 256
      %24 = vsyncadd [#allocation3], %s23
      %s25 = sshll.u32 [#allocation2], 4
      %s26 = int_to_ptr.vmem [resolvable:$true] %s25
      %31 = dma.hbm_to_vmem [thread:$0]  %s0, 256, %s26, [#allocation3], 128, 128, 8
    $region5: #{tpu_custom_call.1} parent=1 // pred_fallthru
      _
    // Predicated region
    $region6: #{tpu_custom_call.1} parent=1 // pred_check
      _
    $region7: #{tpu_custom_call.1} parent=1 // pred_check_branch
      %33 = sbr.rel (0) target = $region9
    $region8: #{tpu_custom_call.1} parent=1 // pred_region
      %s35 = ssub.s32 6144, 6144
      %36 = vsyncadd [#allocation6], %s35
      %s37 = sshll.u32 [#allocation5], 4
      %s38 = int_to_ptr.vmem [resolvable:$true] %s37
      %43 = dma.hbm_to_vmem [thread:$0]  %s1, 6144, %s38, [#allocation6], 128, 128, 8
    $region9: #{tpu_custom_call.1} parent=1 // pred_fallthru
      _
    // Predicated region
    $region10: #{tpu_custom_call.1} parent=1 // pred_check
      _
    $region11: #{tpu_custom_call.1} parent=1 // pred_check_branch
      %45 = sbr.rel (0) target = $region13
    $region12: #{tpu_custom_call.1} parent=1 // pred_region
      %s47 = ssub.s32 6144, 6144
      %48 = vsyncadd [#allocation6], %s47
      %s49 = sshll.u32 [#allocation7], 4
      %s50 = int_to_ptr.vmem [resolvable:$true] %s49
      %55 = dma.hbm_to_vmem [thread:$0]  %s2, 6144, %s50, [#allocation6], 128, 128, 8
    $region13: #{tpu_custom_call.1} parent=1 // pred_fallthru
      _
    // Predicated region
    $region14: #{tpu_custom_call.1} parent=1 // pred_check
      _
    $region15: #{tpu_custom_call.1} parent=1 // pred_check_branch
      %57 = sbr.rel (0) target = $region17
    $region16: #{tpu_custom_call.1} parent=1 // pred_region
      %s59 = ssub.s32 2048, 2048
      %60 = vsyncadd [#allocation9], %s59
      %s61 = sshll.u32 [#allocation8], 4
      %s62 = int_to_ptr.vmem [resolvable:$true] %s61
      %67 = dma.hbm_to_vmem [thread:$0]  %s3, 2048, %s62, [#allocation9], 128, 128, 8
    $region17: #{tpu_custom_call.1} parent=1 // pred_fallthru
      _
    // Predicated region
    $region18: #{tpu_custom_call.1} parent=1 // pred_check
      _
    $region19: #{tpu_custom_call.1} parent=1 // pred_check_branch
      %69 = sbr.rel (0) target = $region21
    $region20: #{tpu_custom_call.1} parent=1 // pred_region
      %s71 = ssub.s32 128, 128
      %72 = vsyncadd [#allocation9], %s71
      %s74 = sshll.u32 [#allocation10], 4
      %s75 = int_to_ptr.vmem [resolvable:$true] %s74
      %77 = dma.hbm_to_vmem [thread:$0]  %s4, 128, %s75, [#allocation9]
    $region21: #{tpu_custom_call.1} parent=1 // pred_fallthru
      _
    // Predicated region
    $region22: #{tpu_custom_call.1} parent=1 // pred_check
      _
    $region23: #{tpu_custom_call.1} parent=1 // pred_check_branch
      %79 = sbr.rel (0) target = $region25
    $region24: #{tpu_custom_call.1} parent=1 // pred_region
      %s81 = ssub.s32 16, 16
      %82 = vsyncadd [#allocation12], %s81
      %s84 = sshll.u32 [#allocation11], 4
      %s85 = int_to_ptr.vmem [resolvable:$true] %s84
      %87 = dma.hbm_to_vmem [thread:$0]  %s5, 16, %s85, [#allocation12]
    $region25: #{tpu_custom_call.1} parent=1 // pred_fallthru
      _
    // Predicated region
    $region26: #{tpu_custom_call.1} parent=1 // pred_check
      _
    $region27: #{tpu_custom_call.1} parent=1 // pred_check_branch
      %89 = sbr.rel (0) target = $region29
    $region28: #{tpu_custom_call.1} parent=1 // pred_region
      %s91 = ssub.s32 16, 16
      %92 = vsyncadd [#allocation12], %s91
      %s94 = sshll.u32 [#allocation13], 4
      %s95 = int_to_ptr.vmem [resolvable:$true] %s94
      %97 = dma.hbm_to_vmem [thread:$0]  %s6, 16, %s95, [#allocation12]
    $region29: #{tpu_custom_call.1} parent=1 // pred_fallthru
      _
    // Predicated region
    $region30: #{tpu_custom_call.1} parent=1 // pred_check
      _
    $region31: #{tpu_custom_call.1} parent=1 // pred_check_branch
      %99 = sbr.rel (0) target = $region33
    $region32: #{tpu_custom_call.1} parent=1 // pred_region
      %s101 = ssub.s32 16, 16
      %102 = vsyncadd [#allocation15], %s101
      %s104 = sshll.u32 [#allocation14], 4
      %s105 = int_to_ptr.vmem [resolvable:$true] %s104
      %107 = dma.hbm_to_vmem [thread:$0]  %s7, 16, %s105, [#allocation15]
    $region33: #{tpu_custom_call.1} parent=1 // pred_fallthru
      _
    // Predicated region
    $region34: #{tpu_custom_call.1} parent=1 // pred_check
      _
    $region35: #{tpu_custom_call.1} parent=1 // pred_check_branch
      %109 = sbr.rel (0) target = $region37
    $region36: #{tpu_custom_call.1} parent=1 // pred_region
      %s111 = ssub.s32 16, 16
      %112 = vsyncadd [#allocation15], %s111
      %s114 = sshll.u32 [#allocation16], 4
      %s115 = int_to_ptr.vmem [resolvable:$true] %s114
      %117 = dma.hbm_to_vmem [thread:$0]  %s8, 16, %s115, [#allocation15]
    $region37: #{tpu_custom_call.1} parent=1 // pred_fallthru
      _
    // Predicated region
    $region38: #{tpu_custom_call.1} parent=1 // pred_check
      _
    $region39: #{tpu_custom_call.1} parent=1 // pred_check_branch
      %119 = sbr.rel (0) target = $region41
    $region40: #{tpu_custom_call.1} parent=1 // pred_region
      %120 = dma.done [#allocation3], 256
    $region41: #{tpu_custom_call.1} parent=1 // pred_fallthru
      _
    // Predicated region
    $region42: #{tpu_custom_call.1} parent=1 // pred_check
      _
    $region43: #{tpu_custom_call.1} parent=1 // pred_check_branch
      %122 = sbr.rel (0) target = $region45
    $region44: #{tpu_custom_call.1} parent=1 // pred_region
      %123 = dma.done [#allocation6], 6144
    $region45: #{tpu_custom_call.1} parent=1 // pred_fallthru
      _
    // Predicated region
    $region46: #{tpu_custom_call.1} parent=1 // pred_check
      _
    $region47: #{tpu_custom_call.1} parent=1 // pred_check_branch
      %125 = sbr.rel (0) target = $region49
    $region48: #{tpu_custom_call.1} parent=1 // pred_region
      %126 = dma.done [#allocation6], 6144
    $region49: #{tpu_custom_call.1} parent=1 // pred_fallthru
      _
    // Predicated region
    $region50: #{tpu_custom_call.1} parent=1 // pred_check
      _
    $region51: #{tpu_custom_call.1} parent=1 // pred_check_branch
      %128 = sbr.rel (0) target = $region53
    $region52: #{tpu_custom_call.1} parent=1 // pred_region
      %129 = dma.done [#allocation9], 2048
    $region53: #{tpu_custom_call.1} parent=1 // pred_fallthru
      _
    // Predicated region
    $region54: #{tpu_custom_call.1} parent=1 // pred_check
      _
    $region55: #{tpu_custom_call.1} parent=1 // pred_check_branch
      %131 = sbr.rel (0) target = $region57
    $region56: #{tpu_custom_call.1} parent=1 // pred_region
      %132 = dma.done [#allocation9], 128
    $region57: #{tpu_custom_call.1} parent=1 // pred_fallthru
      _
    // Predicated region
    $region58: #{tpu_custom_call.1} parent=1 // pred_check
      _
    $region59: #{tpu_custom_call.1} parent=1 // pred_check_branch
      %134 = sbr.rel (0) target = $region61
    $region60: #{tpu_custom_call.1} parent=1 // pred_region
      %135 = dma.done [#allocation12], 16
    $region61: #{tpu_custom_call.1} parent=1 // pred_fallthru
      _
    // Predicated region
    $region62: #{tpu_custom_call.1} parent=1 // pred_check
      _
    $region63: #{tpu_custom_call.1} parent=1 // pred_check_branch
      %137 = sbr.rel (0) target = $region65
    $region64: #{tpu_custom_call.1} parent=1 // pred_region
      %138 = dma.done [#allocation12], 16
    $region65: #{tpu_custom_call.1} parent=1 // pred_fallthru
      _
    // Predicated region
    $region66: #{tpu_custom_call.1} parent=1 // pred_check
      _
    $region67: #{tpu_custom_call.1} parent=1 // pred_check_branch
      %140 = sbr.rel (0) target = $region69
    $region68: #{tpu_custom_call.1} parent=1 // pred_region
      %141 = dma.done [#allocation15], 16
    $region69: #{tpu_custom_call.1} parent=1 // pred_fallthru
      _
    // Predicated region
    $region70: #{tpu_custom_call.1} parent=1 // pred_check
      _
    $region71: #{tpu_custom_call.1} parent=1 // pred_check_branch
      %143 = sbr.rel (0) target = $region73
    $region72: #{tpu_custom_call.1} parent=1 // pred_region
      %144 = dma.done [#allocation15], 16
    $region73: #{tpu_custom_call.1} parent=1 // pred_fallthru
      _
    %v145 = vld [vmem:[#allocation2] sm:$0xff]
    %v146 = vld [vmem:[#allocation2 + $0x8] sm:$0xff]
    %v147 = vld [vmem:[#allocation8] sm:$0xff]
    %v148 = vld [vmem:[#allocation8 + $0x8] sm:$0xff]
    %v149 = vld [vmem:[#allocation8 + $0x10] sm:$0xff]
    %v150 = vld [vmem:[#allocation8 + $0x18] sm:$0xff]
    %v151 = vld [vmem:[#allocation8 + $0x20] sm:$0xff]
    %v152 = vld [vmem:[#allocation8 + $0x28] sm:$0xff]
    %v153 = vld [vmem:[#allocation8 + $0x30] sm:$0xff]
    %v154 = vld [vmem:[#allocation8 + $0x38] sm:$0xff]
    %v155 = vld [vmem:[#allocation8 + $0x40] sm:$0xff]
    %v156 = vld [vmem:[#allocation8 + $0x48] sm:$0xff]
    %v157 = vld [vmem:[#allocation8 + $0x50] sm:$0xff]
    %v158 = vld [vmem:[#allocation8 + $0x58] sm:$0xff]
    %v159 = vld [vmem:[#allocation8 + $0x60] sm:$0xff]
    %v160 = vld [vmem:[#allocation8 + $0x68] sm:$0xff]
    %v161 = vld [vmem:[#allocation8 + $0x70] sm:$0xff]
    %v162 = vld [vmem:[#allocation8 + $0x78] sm:$0xff]
    %v163 = vld [vmem:[#allocation10] sm:$0xff]
    %v164 = vlaneseq
    %v165 = vshrl.u32 %v164, 7
    %v166 = vadd.s32 %v165, 8
    %vm167 = vcmp.lt.s32.totalorder %v165, 0
    %v168 = vsub.s32 0, %v165
    %v169 = vsel %vm167, %v168, %v165
    %v170 = vshrl.u32 %v169, 4
    %v171 = vand.u32 %v169, 15
    %v172 = vsub.s32 0, %v171
    %v173 = vsel %vm167, %v172, %v171
    %vm174 = vcmp.lt.s32.totalorder %v166, 0
    %v175 = vsub.s32 0, %v166
    %v176 = vsel %vm174, %v175, %v166
    %v177 = vshrl.u32 %v176, 4
    %v178 = vand.u32 %v176, 15
    %v179 = vsub.s32 0, %v178
    %v180 = vsel %vm174, %v179, %v178
    %vm181 = vcmp.ne.s32.totalorder %v173, 0
    %vm182 = vcmp.ne.s32.totalorder %v180, 0
    %vm183 = vcmp.lt.s32.totalorder %v173, 0
    %vm184 = vcmp.lt.s32.totalorder %v180, 0
    %vm185 = vmand %vm183, %vm181
    %vm186 = vmand %vm184, %vm182
    %v187 = vadd.s32 %v173, 16
    %v188 = vadd.s32 %v180, 16
    %v189 = vsel %vm185, %v187, %v173
    %v190 = vsel %vm186, %v188, %v180
    %vm191 = vcmp.ne.s32.totalorder %v189, 0
    %vm192 = vcmp.ne.s32.totalorder %v190, 0
    %vm193 = vcmp.ne.s32.totalorder %v189, 15
    %vm194 = vcmp.ne.s32.totalorder %v190, 15
    %v195 = vld [vmem:[#allocation5] sm:$0xff]
    %v196 = vld [vmem:[#allocation5 + $0x8] sm:$0xff]
    %v197 = vld [vmem:[#allocation5 + $0x10] sm:$0xff]
    %v198 = vld [vmem:[#allocation5 + $0x18] sm:$0xff]
    %v199 = vld [vmem:[#allocation5 + $0x20] sm:$0xff]
    %v200 = vld [vmem:[#allocation5 + $0x28] sm:$0xff]
    %v201 = vld [vmem:[#allocation5 + $0x30] sm:$0xff]
    %v202 = vld [vmem:[#allocation5 + $0x38] sm:$0xff]
    %v203 = vld [vmem:[#allocation5 + $0x40] sm:$0xff]
    %v204 = vld [vmem:[#allocation5 + $0x48] sm:$0xff]
    %v205 = vld [vmem:[#allocation5 + $0x50] sm:$0xff]
    %v206 = vld [vmem:[#allocation5 + $0x58] sm:$0xff]
    %v207 = vld [vmem:[#allocation5 + $0x60] sm:$0xff]
    %v208 = vld [vmem:[#allocation5 + $0x68] sm:$0xff]
    %v209 = vld [vmem:[#allocation5 + $0x70] sm:$0xff]
    %v210 = vld [vmem:[#allocation5 + $0x78] sm:$0xff]
    %211 = vmatprep.subr.mxu0 0.0
    %212 = vmatpush1.msra.mxu0 %v195
    %213 = vmatprep.subr.mxu0 0.0
    %214 = vmatpush1.msra.mxu0 %v196
    %215 = vmatprep.subr.mxu0 0.0
    %216 = vmatpush1.msra.mxu0 %v197
    %217 = vmatprep.subr.mxu0 0.0
    %218 = vmatpush1.msra.mxu0 %v198
    %219 = vmatprep.subr.mxu0 0.0
    %220 = vmatpush1.msra.mxu0 %v199
    %221 = vmatprep.subr.mxu0 0.0
    %222 = vmatpush1.msra.mxu0 %v200
    %223 = vmatprep.subr.mxu0 0.0
    %224 = vmatpush1.msra.mxu0 %v201
    %225 = vmatprep.subr.mxu0 0.0
    %226 = vmatpush1.msra.mxu0 %v202
    %227 = vmatprep.subr.mxu0 0.0
    %228 = vmatpush1.msra.mxu0 %v203
    %229 = vmatprep.subr.mxu0 0.0
    %230 = vmatpush1.msra.mxu0 %v204
    %231 = vmatprep.subr.mxu0 0.0
    %232 = vmatpush1.msra.mxu0 %v205
    %233 = vmatprep.subr.mxu0 0.0
    %234 = vmatpush1.msra.mxu0 %v206
    %235 = vmatprep.subr.mxu0 0.0
    %236 = vmatpush1.msra.mxu0 %v207
    %237 = vmatprep.subr.mxu0 0.0
    %238 = vmatpush1.msra.mxu0 %v208
    %239 = vmatprep.subr.mxu0 0.0
    %240 = vmatpush1.msra.mxu0 %v209
    %241 = vmatprep.subr.mxu0 0.0
    %242 = vmatpush1.msra.mxu0 %v210
    %243 = vmatprep.subr.mxu0 0.0
    %244 = vmatpush1.msra.mxu0 0.0
    %245 = vmatprep.subr.mxu0 0.0
    %246 = vmatpush1.msra.mxu0 0.0
    %247 = vmatprep.subr.mxu0 0.0
    %248 = vmatpush1.msra.mxu0 0.0
    %249 = vmatprep.subr.mxu0 0.0
    %250 = vmatpush1.msra.mxu0 0.0
    %251 = vmatprep.subr.mxu0 0.0
    %252 = vmatpush1.msra.mxu0 0.0
    %253 = vmatprep.subr.mxu0 0.0
    %254 = vmatpush1.msra.mxu0 0.0
    %255 = vmatprep.subr.mxu0 0.0
    %256 = vmatpush1.msra.mxu0 0.0
    %257 = vmatprep.subr.mxu0 0.0
    %258 = vmatpush1.msra.mxu0 0.0
    %259 = vmatprep.subr.mxu0 0.0
    %260 = vmatpush1.msra.mxu0 0.0
    %261 = vmatprep.subr.mxu0 0.0
    %262 = vmatpush1.msra.mxu0 0.0
    %263 = vmatprep.subr.mxu0 0.0
    %264 = vmatpush1.msra.mxu0 0.0
    %265 = vmatprep.subr.mxu0 0.0
    %266 = vmatpush1.msra.mxu0 0.0
    %267 = vmatprep.subr.mxu0 0.0
    %268 = vmatpush1.msra.mxu0 0.0
    %269 = vmatprep.subr.mxu0 0.0
    %270 = vmatpush1.msra.mxu0 0.0
    %271 = vmatprep.subr.mxu0 0.0
    %272 = vmatpush1.msra.mxu0 0.0
    %273 = vmatprep.subr.mxu0 0.0
    %274 = vmatpush1.msra.mxu0 0.0
    %275 = vmatprep.mubr.f32.mxu0 0.0
    %276 = vmatmul.mubr.f32.gmra.mrb[0].mxu0 %v145
    %v277 = vpop.f32.mrb[0].mxu0
    %v278 = vadd.f32 0.0, %v277
    %v279 = vpop.f32.mrb[0].mxu0
    %280 = vmatprep.mubr.f32.mxu0 0.0
    %281 = vmatmul.mubr.f32.gmra.mrb[0].mxu0 %v146
    %v282 = vpop.f32.mrb[0].mxu0
    %v283 = vadd.f32 0.0, %v282
    %v284 = vpop.f32.mrb[0].mxu0
    %285 = vdwg.mxu0
    %s286 = scalar_lea.vmem [#allocation5], 128
    %v287 = vld [vmem:[%s286] sm:$0xff]
    %v288 = vld [vmem:[%s286 + $0x8] sm:$0xff]
    %v289 = vld [vmem:[%s286 + $0x10] sm:$0xff]
    %v290 = vld [vmem:[%s286 + $0x18] sm:$0xff]
    %v291 = vld [vmem:[%s286 + $0x20] sm:$0xff]
    %v292 = vld [vmem:[%s286 + $0x28] sm:$0xff]
    %v293 = vld [vmem:[%s286 + $0x30] sm:$0xff]
    %v294 = vld [vmem:[%s286 + $0x38] sm:$0xff]
    %v295 = vld [vmem:[%s286 + $0x40] sm:$0xff]
    %v296 = vld [vmem:[%s286 + $0x48] sm:$0xff]
    %v297 = vld [vmem:[%s286 + $0x50] sm:$0xff]
    %v298 = vld [vmem:[%s286 + $0x58] sm:$0xff]
    %v299 = vld [vmem:[%s286 + $0x60] sm:$0xff]
    %v300 = vld [vmem:[%s286 + $0x68] sm:$0xff]
    %v301 = vld [vmem:[%s286 + $0x70] sm:$0xff]
    %v302 = vld [vmem:[%s286 + $0x78] sm:$0xff]
    %s303 = scalar_lea.vmem [#allocation5], 256
    %v304 = vld [vmem:[%s303] sm:$0xff]
    %v305 = vld [vmem:[%s303 + $0x8] sm:$0xff]
    %v306 = vld [vmem:[%s303 + $0x10] sm:$0xff]
    %v307 = vld [vmem:[%s303 + $0x18] sm:$0xff]
    %v308 = vld [vmem:[%s303 + $0x20] sm:$0xff]
    %v309 = vld [vmem:[%s303 + $0x28] sm:$0xff]
    %v310 = vld [vmem:[%s303 + $0x30] sm:$0xff]
    %v311 = vld [vmem:[%s303 + $0x38] sm:$0xff]
    %v312 = vld [vmem:[%s303 + $0x40] sm:$0xff]
    %v313 = vld [vmem:[%s303 + $0x48] sm:$0xff]
    %v314 = vld [vmem:[%s303 + $0x50] sm:$0xff]
    %v315 = vld [vmem:[%s303 + $0x58] sm:$0xff]
    %v316 = vld [vmem:[%s303 + $0x60] sm:$0xff]
    %v317 = vld [vmem:[%s303 + $0x68] sm:$0xff]
    %v318 = vld [vmem:[%s303 + $0x70] sm:$0xff]
    %v319 = vld [vmem:[%s303 + $0x78] sm:$0xff]
    %320 = vmatprep.subr.mxu0 0.0
    %321 = vmatpush1.msra.mxu0 %v304
    %322 = vmatprep.subr.mxu0 0.0
    %323 = vmatpush1.msra.mxu0 %v305
    %324 = vmatprep.subr.mxu0 0.0
    %325 = vmatpush1.msra.mxu0 %v306
    %326 = vmatprep.subr.mxu0 0.0
    %327 = vmatpush1.msra.mxu0 %v307
    %328 = vmatprep.subr.mxu0 0.0
    %329 = vmatpush1.msra.mxu0 %v308
    %330 = vmatprep.subr.mxu0 0.0
    %331 = vmatpush1.msra.mxu0 %v309
    %332 = vmatprep.subr.mxu0 0.0
    %333 = vmatpush1.msra.mxu0 %v310
    %334 = vmatprep.subr.mxu0 0.0
    %335 = vmatpush1.msra.mxu0 %v311
    %336 = vmatprep.subr.mxu0 0.0
    %337 = vmatpush1.msra.mxu0 %v312
    %338 = vmatprep.subr.mxu0 0.0
    %339 = vmatpush1.msra.mxu0 %v313
    %340 = vmatprep.subr.mxu0 0.0
    %341 = vmatpush1.msra.mxu0 %v314
    %342 = vmatprep.subr.mxu0 0.0
    %343 = vmatpush1.msra.mxu0 %v315
    %344 = vmatprep.subr.mxu0 0.0
    %345 = vmatpush1.msra.mxu0 %v316
    %346 = vmatprep.subr.mxu0 0.0
    %347 = vmatpush1.msra.mxu0 %v317
    %348 = vmatprep.subr.mxu0 0.0
    %349 = vmatpush1.msra.mxu0 %v318
    %350 = vmatprep.subr.mxu0 0.0
    %351 = vmatpush1.msra.mxu0 %v319
    %352 = vmatprep.subr.mxu0 0.0
    %353 = vmatpush1.msra.mxu0 0.0
    %354 = vmatprep.subr.mxu0 0.0
    %355 = vmatpush1.msra.mxu0 0.0
    %356 = vmatprep.subr.mxu0 0.0
    %357 = vmatpush1.msra.mxu0 0.0
    %358 = vmatprep.subr.mxu0 0.0
    %359 = vmatpush1.msra.mxu0 0.0
    %360 = vmatprep.subr.mxu0 0.0
    %361 = vmatpush1.msra.mxu0 0.0
    %362 = vmatprep.subr.mxu0 0.0
    %363 = vmatpush1.msra.mxu0 0.0
    %364 = vmatprep.subr.mxu0 0.0
    %365 = vmatpush1.msra.mxu0 0.0
    %366 = vmatprep.subr.mxu0 0.0
    %367 = vmatpush1.msra.mxu0 0.0
    %368 = vmatprep.subr.mxu0 0.0
    %369 = vmatpush1.msra.mxu0 0.0
    %370 = vmatprep.subr.mxu0 0.0
    %371 = vmatpush1.msra.mxu0 0.0
    %372 = vmatprep.subr.mxu0 0.0
    %373 = vmatpush1.msra.mxu0 0.0
    %374 = vmatprep.subr.mxu0 0.0
    %375 = vmatpush1.msra.mxu0 0.0
    %376 = vmatprep.subr.mxu0 0.0
    %377 = vmatpush1.msra.mxu0 0.0
    %378 = vmatprep.subr.mxu0 0.0
    %379 = vmatpush1.msra.mxu0 0.0
    %380 = vmatprep.subr.mxu0 0.0
    %381 = vmatpush1.msra.mxu0 0.0
    %382 = vmatprep.subr.mxu0 0.0
    %383 = vmatpush1.msra.mxu0 0.0
    %384 = vmatprep.mubr.f32.mxu0 0.0
    %385 = vmatmul.mubr.f32.gmra.mrb[0].mxu0 %v145
    %v386 = vpop.f32.mrb[0].mxu0
    %v387 = vadd.f32 0.0, %v386
    %v388 = vpop.f32.mrb[0].mxu0
    %389 = vmatprep.mubr.f32.mxu0 0.0
    %390 = vmatmul.mubr.f32.gmra.mrb[0].mxu0 %v146
    %v391 = vpop.f32.mrb[0].mxu0
    %v392 = vadd.f32 0.0, %v391
    %v393 = vpop.f32.mrb[0].mxu0
    %394 = vdwg.mxu0
    %v395 = vrot.slane %v278, 7
    %v396 = vrot.slane %v283, 7
    %vm397 = vcmp.lt.s32.totalorder %v165, 1
    %v398 = vsel %vm397, %v395, %v396
    %v399 = vsel %vm397, %v396, %v395
    %v400 = vsel %vm191, %v399, 0.0
    %v401 = vsel %vm192, %v398, 0.0
    %v402 = vrot.slane %v387, 1
    %v403 = vrot.slane %v392, 1
    %vm404 = vcmp.lt.s32.totalorder %v165, 7
    %v405 = vsel %vm404, %v402, %v403
    %v406 = vsel %vm404, %v403, %v402
    %v407 = vsel %vm193, %v405, 0.0
    %v408 = vsel %vm194, %v406, 0.0
    %409 = vmatprep.subr.mxu0 0.0
    %410 = vmatpush1.msra.mxu0 %v287
    %411 = vmatprep.subr.mxu0 0.0
    %412 = vmatpush1.msra.mxu0 %v288
    %413 = vmatprep.subr.mxu0 0.0
    %414 = vmatpush1.msra.mxu0 %v289
    %415 = vmatprep.subr.mxu0 0.0
    %416 = vmatpush1.msra.mxu0 %v290
    %417 = vmatprep.subr.mxu0 0.0
    %418 = vmatpush1.msra.mxu0 %v291
    %419 = vmatprep.subr.mxu0 0.0
    %420 = vmatpush1.msra.mxu0 %v292
    %421 = vmatprep.subr.mxu0 0.0
    %422 = vmatpush1.msra.mxu0 %v293
    %423 = vmatprep.subr.mxu0 0.0
    %424 = vmatpush1.msra.mxu0 %v294
    %425 = vmatprep.subr.mxu0 0.0
    %426 = vmatpush1.msra.mxu0 %v295
    %427 = vmatprep.subr.mxu0 0.0
    %428 = vmatpush1.msra.mxu0 %v296
    %429 = vmatprep.subr.mxu0 0.0
    %430 = vmatpush1.msra.mxu0 %v297
    %431 = vmatprep.subr.mxu0 0.0
    %432 = vmatpush1.msra.mxu0 %v298
    %433 = vmatprep.subr.mxu0 0.0
    %434 = vmatpush1.msra.mxu0 %v299
    %435 = vmatprep.subr.mxu0 0.0
    %436 = vmatpush1.msra.mxu0 %v300
    %437 = vmatprep.subr.mxu0 0.0
    %438 = vmatpush1.msra.mxu0 %v301
    %439 = vmatprep.subr.mxu0 0.0
    %440 = vmatpush1.msra.mxu0 %v302
    %441 = vmatprep.subr.mxu0 0.0
    %442 = vmatpush1.msra.mxu0 0.0
    %443 = vmatprep.subr.mxu0 0.0
    %444 = vmatpush1.msra.mxu0 0.0
    %445 = vmatprep.subr.mxu0 0.0
    %446 = vmatpush1.msra.mxu0 0.0
    %447 = vmatprep.subr.mxu0 0.0
    %448 = vmatpush1.msra.mxu0 0.0
    %449 = vmatprep.subr.mxu0 0.0
    %450 = vmatpush1.msra.mxu0 0.0
    %451 = vmatprep.subr.mxu0 0.0
    %452 = vmatpush1.msra.mxu0 0.0
    %453 = vmatprep.subr.mxu0 0.0
    %454 = vmatpush1.msra.mxu0 0.0
    %455 = vmatprep.subr.mxu0 0.0
    %456 = vmatpush1.msra.mxu0 0.0
    %457 = vmatprep.subr.mxu0 0.0
    %458 = vmatpush1.msra.mxu0 0.0
    %459 = vmatprep.subr.mxu0 0.0
    %460 = vmatpush1.msra.mxu0 0.0
    %461 = vmatprep.subr.mxu0 0.0
    %462 = vmatpush1.msra.mxu0 0.0
    %463 = vmatprep.subr.mxu0 0.0
    %464 = vmatpush1.msra.mxu0 0.0
    %465 = vmatprep.subr.mxu0 0.0
    %466 = vmatpush1.msra.mxu0 0.0
    %467 = vmatprep.subr.mxu0 0.0
    %468 = vmatpush1.msra.mxu0 0.0
    %469 = vmatprep.subr.mxu0 0.0
    %470 = vmatpush1.msra.mxu0 0.0
    %471 = vmatprep.subr.mxu0 0.0
    %472 = vmatpush1.msra.mxu0 0.0
    %473 = vmatprep.mubr.f32.mxu0 0.0
    %474 = vmatmul.mubr.f32.gmra.mrb[0].mxu0 %v145
    %v475 = vpop.f32.mrb[0].mxu0
    %v476 = vadd.f32 %v400, %v475
    %v477 = vpop.f32.mrb[0].mxu0
    %478 = vmatprep.mubr.f32.mxu0 0.0
    %479 = vmatmul.mubr.f32.gmra.mrb[0].mxu0 %v146
    %v480 = vpop.f32.mrb[0].mxu0
    %v481 = vadd.f32 %v401, %v480
    %v482 = vpop.f32.mrb[0].mxu0
    %483 = vdwg.mxu0
    %v484 = vadd.f32 %v476, %v407
    %v485 = vadd.f32 %v481, %v408
    %v486 = vld [vmem:[#allocation11] sm:$0x1]
    %v487 = vld [vmem:[#allocation13] sm:$0x1]
    %v488 = vadd.f32 %v484, %v485
    %v489 = vrot.slane %v488, 4
    %v490 = vadd.f32 %v488, %v489
    %v491 = vrot.slane %v490, 2
    %v492 = vadd.f32 %v490, %v491
    %v493 = vrot.slane %v492, 1
    %v494 = vadd.f32 %v492, %v493
    %495 = vmatprep.subr.mxu0 0.0
    %496 = vmatpush1.msra.mxu0 %v147
    %497 = vmatprep.subr.mxu0 0.0
    %498 = vmatpush1.msra.mxu0 %v148
    %499 = vmatprep.subr.mxu0 0.0
    %500 = vmatpush1.msra.mxu0 %v149
    %501 = vmatprep.subr.mxu0 0.0
    %502 = vmatpush1.msra.mxu0 %v150
    %503 = vmatprep.subr.mxu0 0.0
    %504 = vmatpush1.msra.mxu0 %v151
    %505 = vmatprep.subr.mxu0 0.0
    %506 = vmatpush1.msra.mxu0 %v152
    %507 = vmatprep.subr.mxu0 0.0
    %508 = vmatpush1.msra.mxu0 %v153
    %509 = vmatprep.subr.mxu0 0.0
    %510 = vmatpush1.msra.mxu0 %v154
    %511 = vmatprep.subr.mxu0 0.0
    %512 = vmatpush1.msra.mxu0 %v155
    %513 = vmatprep.subr.mxu0 0.0
    %514 = vmatpush1.msra.mxu0 %v156
    %515 = vmatprep.subr.mxu0 0.0
    %516 = vmatpush1.msra.mxu0 %v157
    %517 = vmatprep.subr.mxu0 0.0
    %518 = vmatpush1.msra.mxu0 %v158
    %519 = vmatprep.subr.mxu0 0.0
    %520 = vmatpush1.msra.mxu0 %v159
    %521 = vmatprep.subr.mxu0 0.0
    %522 = vmatpush1.msra.mxu0 %v160
    %523 = vmatprep.subr.mxu0 0.0
    %524 = vmatpush1.msra.mxu0 %v161
    %525 = vmatprep.subr.mxu0 0.0
    %526 = vmatpush1.msra.mxu0 %v162
    %527 = vmatprep.subr.mxu0 0.0
    %528 = vmatpush1.msra.mxu0 0.0
    %529 = vmatprep.subr.mxu0 0.0
    %530 = vmatpush1.msra.mxu0 0.0
    %531 = vmatprep.subr.mxu0 0.0
    %532 = vmatpush1.msra.mxu0 0.0
    %533 = vmatprep.subr.mxu0 0.0
    %534 = vmatpush1.msra.mxu0 0.0
    %535 = vmatprep.subr.mxu0 0.0
    %536 = vmatpush1.msra.mxu0 0.0
    %537 = vmatprep.subr.mxu0 0.0
    %538 = vmatpush1.msra.mxu0 0.0
    %539 = vmatprep.subr.mxu0 0.0
    %540 = vmatpush1.msra.mxu0 0.0
    %541 = vmatprep.subr.mxu0 0.0
    %542 = vmatpush1.msra.mxu0 0.0
    %543 = vmatprep.subr.mxu0 0.0
    %544 = vmatpush1.msra.mxu0 0.0
    %545 = vmatprep.subr.mxu0 0.0
    %546 = vmatpush1.msra.mxu0 0.0
    %547 = vmatprep.subr.mxu0 0.0
    %548 = vmatpush1.msra.mxu0 0.0
    %549 = vmatprep.subr.mxu0 0.0
    %550 = vmatpush1.msra.mxu0 0.0
    %551 = vmatprep.subr.mxu0 0.0
    %552 = vmatpush1.msra.mxu0 0.0
    %553 = vmatprep.subr.mxu0 0.0
    %554 = vmatpush1.msra.mxu0 0.0
    %555 = vmatprep.subr.mxu0 0.0
    %556 = vmatpush1.msra.mxu0 0.0
    %557 = vmatprep.subr.mxu0 0.0
    %558 = vmatpush1.msra.mxu0 0.0
    %559 = vmatprep.mubr.f32.mxu0 0.0
    %560 = vmatmul.mubr.f32.gmra.mrb[0].mxu0 %v494
    %v561 = vpop.f32.mrb[0].mxu0
    %v562 = vadd.f32 0.0, %v561
    %v563 = vpop.f32.mrb[0].mxu0
    %564 = vdwg.mxu0
    %v565 = vmul.f32 %v562, 0.00390625
    %vm566 = vcmask 64512
    %v568 = vsel %vm566, %v565, 0
    %570 = vmatprep.subr.mxu0 0.0
    %571 = vmatpush1.msra.mxu0 %v163
    %572 = vmatprep.subr.mxu0 0.0
    %573 = vmatpush1.msra.mxu0 0.0
    %574 = vmatprep.subr.mxu0 0.0
    %575 = vmatpush1.msra.mxu0 0.0
    %576 = vmatprep.subr.mxu0 0.0
    %577 = vmatpush1.msra.mxu0 0.0
    %578 = vmatprep.subr.mxu0 0.0
    %579 = vmatpush1.msra.mxu0 0.0
    %580 = vmatprep.subr.mxu0 0.0
    %581 = vmatpush1.msra.mxu0 0.0
    %582 = vmatprep.subr.mxu0 0.0
    %583 = vmatpush1.msra.mxu0 0.0
    %584 = vmatprep.subr.mxu0 0.0
    %585 = vmatpush1.msra.mxu0 0.0
    %586 = vmatprep.subr.mxu0 0.0
    %587 = vmatpush1.msra.mxu0 0.0
    %588 = vmatprep.subr.mxu0 0.0
    %589 = vmatpush1.msra.mxu0 0.0
    %590 = vmatprep.subr.mxu0 0.0
    %591 = vmatpush1.msra.mxu0 0.0
    %592 = vmatprep.subr.mxu0 0.0
    %593 = vmatpush1.msra.mxu0 0.0
    %594 = vmatprep.subr.mxu0 0.0
    %595 = vmatpush1.msra.mxu0 0.0
    %596 = vmatprep.subr.mxu0 0.0
    %597 = vmatpush1.msra.mxu0 0.0
    %598 = vmatprep.subr.mxu0 0.0
    %599 = vmatpush1.msra.mxu0 0.0
    %600 = vmatprep.subr.mxu0 0.0
    %601 = vmatpush1.msra.mxu0 0.0
    %602 = vmatprep.subr.mxu0 0.0
    %603 = vmatpush1.msra.mxu0 0.0
    %604 = vmatprep.subr.mxu0 0.0
    %605 = vmatpush1.msra.mxu0 0.0
    %606 = vmatprep.subr.mxu0 0.0
    %607 = vmatpush1.msra.mxu0 0.0
    %608 = vmatprep.subr.mxu0 0.0
    %609 = vmatpush1.msra.mxu0 0.0
    %610 = vmatprep.subr.mxu0 0.0
    %611 = vmatpush1.msra.mxu0 0.0
    %612 = vmatprep.subr.mxu0 0.0
    %613 = vmatpush1.msra.mxu0 0.0
    %614 = vmatprep.subr.mxu0 0.0
    %615 = vmatpush1.msra.mxu0 0.0
    %616 = vmatprep.subr.mxu0 0.0
    %617 = vmatpush1.msra.mxu0 0.0
    %618 = vmatprep.subr.mxu0 0.0
    %619 = vmatpush1.msra.mxu0 0.0
    %620 = vmatprep.subr.mxu0 0.0
    %621 = vmatpush1.msra.mxu0 0.0
    %622 = vmatprep.subr.mxu0 0.0
    %623 = vmatpush1.msra.mxu0 0.0
    %624 = vmatprep.subr.mxu0 0.0
    %625 = vmatpush1.msra.mxu0 0.0
    %626 = vmatprep.subr.mxu0 0.0
    %627 = vmatpush1.msra.mxu0 0.0
    %628 = vmatprep.subr.mxu0 0.0
    %629 = vmatpush1.msra.mxu0 0.0
    %630 = vmatprep.subr.mxu0 0.0
    %631 = vmatpush1.msra.mxu0 0.0
    %632 = vmatprep.subr.mxu0 0.0
    %633 = vmatpush1.msra.mxu0 0.0
    %634 = vmatprep.mubr.f32.mxu0 0.0
    %635 = vmatmul.mubr.f32.gmra.mrb[0].mxu0 %v568
    %v636 = vpop.f32.mrb[0].mxu0
    %v637 = vadd.f32 0.0, %v636
    %v638 = vpop.f32.mrb[0].mxu0
    %639 = vdwg.mxu0
    %v640 = vlaneseq
    %v641 = vshrl.u32 %v640, 7
    %v642 = vsub.s32 0, %v641
    %v643 = vrot.slane %v637, %v642
    %v644 = vsub.f32 %v484, %v643
    %v645 = vsub.f32 %v485, %v643
    %v646 = vmul.f32 %v644, %v644
    %v647 = vmul.f32 %v645, %v645
    %v648 = vadd.f32 %v646, %v647
    %v649 = vrot.slane %v648, 4
    %v650 = vadd.f32 %v648, %v649
    %v651 = vrot.slane %v650, 2
    %v652 = vadd.f32 %v650, %v651
    %v653 = vrot.slane %v652, 1
    %v654 = vadd.f32 %v652, %v653
    %655 = vmatprep.subr.mxu0 0.0
    %656 = vmatpush1.msra.mxu0 %v147
    %657 = vmatprep.subr.mxu0 0.0
    %658 = vmatpush1.msra.mxu0 %v148
    %659 = vmatprep.subr.mxu0 0.0
    %660 = vmatpush1.msra.mxu0 %v149
    %661 = vmatprep.subr.mxu0 0.0
    %662 = vmatpush1.msra.mxu0 %v150
    %663 = vmatprep.subr.mxu0 0.0
    %664 = vmatpush1.msra.mxu0 %v151
    %665 = vmatprep.subr.mxu0 0.0
    %666 = vmatpush1.msra.mxu0 %v152
    %667 = vmatprep.subr.mxu0 0.0
    %668 = vmatpush1.msra.mxu0 %v153
    %669 = vmatprep.subr.mxu0 0.0
    %670 = vmatpush1.msra.mxu0 %v154
    %671 = vmatprep.subr.mxu0 0.0
    %672 = vmatpush1.msra.mxu0 %v155
    %673 = vmatprep.subr.mxu0 0.0
    %674 = vmatpush1.msra.mxu0 %v156
    %675 = vmatprep.subr.mxu0 0.0
    %676 = vmatpush1.msra.mxu0 %v157
    %677 = vmatprep.subr.mxu0 0.0
    %678 = vmatpush1.msra.mxu0 %v158
    %679 = vmatprep.subr.mxu0 0.0
    %680 = vmatpush1.msra.mxu0 %v159
    %681 = vmatprep.subr.mxu0 0.0
    %682 = vmatpush1.msra.mxu0 %v160
    %683 = vmatprep.subr.mxu0 0.0
    %684 = vmatpush1.msra.mxu0 %v161
    %685 = vmatprep.subr.mxu0 0.0
    %686 = vmatpush1.msra.mxu0 %v162
    %687 = vmatprep.subr.mxu0 0.0
    %688 = vmatpush1.msra.mxu0 0.0
    %689 = vmatprep.subr.mxu0 0.0
    %690 = vmatpush1.msra.mxu0 0.0
    %691 = vmatprep.subr.mxu0 0.0
    %692 = vmatpush1.msra.mxu0 0.0
    %693 = vmatprep.subr.mxu0 0.0
    %694 = vmatpush1.msra.mxu0 0.0
    %695 = vmatprep.subr.mxu0 0.0
    %696 = vmatpush1.msra.mxu0 0.0
    %697 = vmatprep.subr.mxu0 0.0
    %698 = vmatpush1.msra.mxu0 0.0
    %699 = vmatprep.subr.mxu0 0.0
    %700 = vmatpush1.msra.mxu0 0.0
    %701 = vmatprep.subr.mxu0 0.0
    %702 = vmatpush1.msra.mxu0 0.0
    %703 = vmatprep.subr.mxu0 0.0
    %704 = vmatpush1.msra.mxu0 0.0
    %705 = vmatprep.subr.mxu0 0.0
    %706 = vmatpush1.msra.mxu0 0.0
    %707 = vmatprep.subr.mxu0 0.0
    %708 = vmatpush1.msra.mxu0 0.0
    %709 = vmatprep.subr.mxu0 0.0
    %710 = vmatpush1.msra.mxu0 0.0
    %711 = vmatprep.subr.mxu0 0.0
    %712 = vmatpush1.msra.mxu0 0.0
    %713 = vmatprep.subr.mxu0 0.0
    %714 = vmatpush1.msra.mxu0 0.0
    %715 = vmatprep.subr.mxu0 0.0
    %716 = vmatpush1.msra.mxu0 0.0
    %717 = vmatprep.subr.mxu0 0.0
    %718 = vmatpush1.msra.mxu0 0.0
    %719 = vmatprep.mubr.f32.mxu0 0.0
    %720 = vmatmul.mubr.f32.gmra.mrb[0].mxu0 %v654
    %v721 = vpop.f32.mrb[0].mxu0
    %v722 = vadd.f32 0.0, %v721
    %v723 = vpop.f32.mrb[0].mxu0
    %724 = vdwg.mxu0
    %v725 = vmul.f32 %v722, 0.00390625
    %v726 = vadd.f32 %v725, 1e-05
    %v727 = vrsqrt.pop %v726
    %v728 = vmul.f32 %v486, %v727
    %v730 = vsel %vm566, %v728, 0
    %732 = vmatprep.subr.mxu0 0.0
    %733 = vmatpush1.msra.mxu0 %v163
    %734 = vmatprep.subr.mxu0 0.0
    %735 = vmatpush1.msra.mxu0 0.0
    %736 = vmatprep.subr.mxu0 0.0
    %737 = vmatpush1.msra.mxu0 0.0
    %738 = vmatprep.subr.mxu0 0.0
    %739 = vmatpush1.msra.mxu0 0.0
    %740 = vmatprep.subr.mxu0 0.0
    %741 = vmatpush1.msra.mxu0 0.0
    %742 = vmatprep.subr.mxu0 0.0
    %743 = vmatpush1.msra.mxu0 0.0
    %744 = vmatprep.subr.mxu0 0.0
    %745 = vmatpush1.msra.mxu0 0.0
    %746 = vmatprep.subr.mxu0 0.0
    %747 = vmatpush1.msra.mxu0 0.0
    %748 = vmatprep.subr.mxu0 0.0
    %749 = vmatpush1.msra.mxu0 0.0
    %750 = vmatprep.subr.mxu0 0.0
    %751 = vmatpush1.msra.mxu0 0.0
    %752 = vmatprep.subr.mxu0 0.0
    %753 = vmatpush1.msra.mxu0 0.0
    %754 = vmatprep.subr.mxu0 0.0
    %755 = vmatpush1.msra.mxu0 0.0
    %756 = vmatprep.subr.mxu0 0.0
    %757 = vmatpush1.msra.mxu0 0.0
    %758 = vmatprep.subr.mxu0 0.0
    %759 = vmatpush1.msra.mxu0 0.0
    %760 = vmatprep.subr.mxu0 0.0
    %761 = vmatpush1.msra.mxu0 0.0
    %762 = vmatprep.subr.mxu0 0.0
    %763 = vmatpush1.msra.mxu0 0.0
    %764 = vmatprep.subr.mxu0 0.0
    %765 = vmatpush1.msra.mxu0 0.0
    %766 = vmatprep.subr.mxu0 0.0
    %767 = vmatpush1.msra.mxu0 0.0
    %768 = vmatprep.subr.mxu0 0.0
    %769 = vmatpush1.msra.mxu0 0.0
    %770 = vmatprep.subr.mxu0 0.0
    %771 = vmatpush1.msra.mxu0 0.0
    %772 = vmatprep.subr.mxu0 0.0
    %773 = vmatpush1.msra.mxu0 0.0
    %774 = vmatprep.subr.mxu0 0.0
    %775 = vmatpush1.msra.mxu0 0.0
    %776 = vmatprep.subr.mxu0 0.0
    %777 = vmatpush1.msra.mxu0 0.0
    %778 = vmatprep.subr.mxu0 0.0
    %779 = vmatpush1.msra.mxu0 0.0
    %780 = vmatprep.subr.mxu0 0.0
    %781 = vmatpush1.msra.mxu0 0.0
    %782 = vmatprep.subr.mxu0 0.0
    %783 = vmatpush1.msra.mxu0 0.0
    %784 = vmatprep.subr.mxu0 0.0
    %785 = vmatpush1.msra.mxu0 0.0
    %786 = vmatprep.subr.mxu0 0.0
    %787 = vmatpush1.msra.mxu0 0.0
    %788 = vmatprep.subr.mxu0 0.0
    %789 = vmatpush1.msra.mxu0 0.0
    %790 = vmatprep.subr.mxu0 0.0
    %791 = vmatpush1.msra.mxu0 0.0
    %792 = vmatprep.subr.mxu0 0.0
    %793 = vmatpush1.msra.mxu0 0.0
    %794 = vmatprep.subr.mxu0 0.0
    %795 = vmatpush1.msra.mxu0 0.0
    %796 = vmatprep.mubr.f32.mxu0 0.0
    %797 = vmatmul.mubr.f32.gmra.mrb[0].mxu0 %v730
    %v798 = vpop.f32.mrb[0].mxu0
    %v799 = vadd.f32 0.0, %v798
    %v800 = vpop.f32.mrb[0].mxu0
    %801 = vdwg.mxu0
    %v802 = vlaneseq
    %v803 = vshrl.u32 %v802, 7
    %v804 = vsub.s32 0, %v803
    %v805 = vrot.slane %v799, %v804
    %v806 = vmul.f32 %v644, %v805
    %v807 = vmul.f32 %v645, %v805
    %v809 = vlaneseq
    %v810 = vshrl.u32 %v809, 7
    %v811 = vsub.s32 0, %v810
    %v812 = vrot.slane %v487, %v811
    %v814 = vadd.f32 %v806, %v812
    %v815 = vadd.f32 %v807, %v812
    %v816 = vmax.f32 %v814, 0.0
    %v817 = vmax.f32 %v815, 0.0
    %v818 = vld [vmem:[#allocation7] sm:$0xff]
    %v819 = vld [vmem:[#allocation7 + $0x8] sm:$0xff]
    %v820 = vld [vmem:[#allocation7 + $0x10] sm:$0xff]
    %v821 = vld [vmem:[#allocation7 + $0x18] sm:$0xff]
    %v822 = vld [vmem:[#allocation7 + $0x20] sm:$0xff]
    %v823 = vld [vmem:[#allocation7 + $0x28] sm:$0xff]
    %v824 = vld [vmem:[#allocation7 + $0x30] sm:$0xff]
    %v825 = vld [vmem:[#allocation7 + $0x38] sm:$0xff]
    %v826 = vld [vmem:[#allocation7 + $0x40] sm:$0xff]
    %v827 = vld [vmem:[#allocation7 + $0x48] sm:$0xff]
    %v828 = vld [vmem:[#allocation7 + $0x50] sm:$0xff]
    %v829 = vld [vmem:[#allocation7 + $0x58] sm:$0xff]
    %v830 = vld [vmem:[#allocation7 + $0x60] sm:$0xff]
    %v831 = vld [vmem:[#allocation7 + $0x68] sm:$0xff]
    %v832 = vld [vmem:[#allocation7 + $0x70] sm:$0xff]
    %v833 = vld [vmem:[#allocation7 + $0x78] sm:$0xff]
    %834 = vmatprep.subr.mxu0 0.0
    %835 = vmatpush1.msra.mxu0 %v818
    %836 = vmatprep.subr.mxu0 0.0
    %837 = vmatpush1.msra.mxu0 %v819
    %838 = vmatprep.subr.mxu0 0.0
    %839 = vmatpush1.msra.mxu0 %v820
    %840 = vmatprep.subr.mxu0 0.0
    %841 = vmatpush1.msra.mxu0 %v821
    %842 = vmatprep.subr.mxu0 0.0
    %843 = vmatpush1.msra.mxu0 %v822
    %844 = vmatprep.subr.mxu0 0.0
    %845 = vmatpush1.msra.mxu0 %v823
    %846 = vmatprep.subr.mxu0 0.0
    %847 = vmatpush1.msra.mxu0 %v824
    %848 = vmatprep.subr.mxu0 0.0
    %849 = vmatpush1.msra.mxu0 %v825
    %850 = vmatprep.subr.mxu0 0.0
    %851 = vmatpush1.msra.mxu0 %v826
    %852 = vmatprep.subr.mxu0 0.0
    %853 = vmatpush1.msra.mxu0 %v827
    %854 = vmatprep.subr.mxu0 0.0
    %855 = vmatpush1.msra.mxu0 %v828
    %856 = vmatprep.subr.mxu0 0.0
    %857 = vmatpush1.msra.mxu0 %v829
    %858 = vmatprep.subr.mxu0 0.0
    %859 = vmatpush1.msra.mxu0 %v830
    %860 = vmatprep.subr.mxu0 0.0
    %861 = vmatpush1.msra.mxu0 %v831
    %862 = vmatprep.subr.mxu0 0.0
    %863 = vmatpush1.msra.mxu0 %v832
    %864 = vmatprep.subr.mxu0 0.0
    %865 = vmatpush1.msra.mxu0 %v833
    %866 = vmatprep.subr.mxu0 0.0
    %867 = vmatpush1.msra.mxu0 0.0
    %868 = vmatprep.subr.mxu0 0.0
    %869 = vmatpush1.msra.mxu0 0.0
    %870 = vmatprep.subr.mxu0 0.0
    %871 = vmatpush1.msra.mxu0 0.0
    %872 = vmatprep.subr.mxu0 0.0
    %873 = vmatpush1.msra.mxu0 0.0
    %874 = vmatprep.subr.mxu0 0.0
    %875 = vmatpush1.msra.mxu0 0.0
    %876 = vmatprep.subr.mxu0 0.0
    %877 = vmatpush1.msra.mxu0 0.0
    %878 = vmatprep.subr.mxu0 0.0
    %879 = vmatpush1.msra.mxu0 0.0
    %880 = vmatprep.subr.mxu0 0.0
    %881 = vmatpush1.msra.mxu0 0.0
    %882 = vmatprep.subr.mxu0 0.0
    %883 = vmatpush1.msra.mxu0 0.0
    %884 = vmatprep.subr.mxu0 0.0
    %885 = vmatpush1.msra.mxu0 0.0
    %886 = vmatprep.subr.mxu0 0.0
    %887 = vmatpush1.msra.mxu0 0.0
    %888 = vmatprep.subr.mxu0 0.0
    %889 = vmatpush1.msra.mxu0 0.0
    %890 = vmatprep.subr.mxu0 0.0
    %891 = vmatpush1.msra.mxu0 0.0
    %892 = vmatprep.subr.mxu0 0.0
    %893 = vmatpush1.msra.mxu0 0.0
    %894 = vmatprep.subr.mxu0 0.0
    %895 = vmatpush1.msra.mxu0 0.0
    %896 = vmatprep.subr.mxu0 0.0
    %897 = vmatpush1.msra.mxu0 0.0
    %898 = vmatprep.mubr.f32.mxu0 0.0
    %899 = vmatmul.mubr.f32.gmra.mrb[0].mxu0 %v816
    %v900 = vpop.f32.mrb[0].mxu0
    %v901 = vadd.f32 0.0, %v900
    %v902 = vpop.f32.mrb[0].mxu0
    %903 = vmatprep.mubr.f32.mxu0 0.0
    %904 = vmatmul.mubr.f32.gmra.mrb[0].mxu0 %v817
    %v905 = vpop.f32.mrb[0].mxu0
    %v906 = vadd.f32 0.0, %v905
    %v907 = vpop.f32.mrb[0].mxu0
    %908 = vdwg.mxu0
    %s909 = scalar_lea.vmem [#allocation7], 128
    %v910 = vld [vmem:[%s909] sm:$0xff]
    %v911 = vld [vmem:[%s909 + $0x8] sm:$0xff]
    %v912 = vld [vmem:[%s909 + $0x10] sm:$0xff]
    %v913 = vld [vmem:[%s909 + $0x18] sm:$0xff]
    %v914 = vld [vmem:[%s909 + $0x20] sm:$0xff]
    %v915 = vld [vmem:[%s909 + $0x28] sm:$0xff]
    %v916 = vld [vmem:[%s909 + $0x30] sm:$0xff]
    %v917 = vld [vmem:[%s909 + $0x38] sm:$0xff]
    %v918 = vld [vmem:[%s909 + $0x40] sm:$0xff]
    %v919 = vld [vmem:[%s909 + $0x48] sm:$0xff]
    %v920 = vld [vmem:[%s909 + $0x50] sm:$0xff]
    %v921 = vld [vmem:[%s909 + $0x58] sm:$0xff]
    %v922 = vld [vmem:[%s909 + $0x60] sm:$0xff]
    %v923 = vld [vmem:[%s909 + $0x68] sm:$0xff]
    %v924 = vld [vmem:[%s909 + $0x70] sm:$0xff]
    %v925 = vld [vmem:[%s909 + $0x78] sm:$0xff]
    %s926 = scalar_lea.vmem [#allocation7], 256
    %v927 = vld [vmem:[%s926] sm:$0xff]
    %v928 = vld [vmem:[%s926 + $0x8] sm:$0xff]
    %v929 = vld [vmem:[%s926 + $0x10] sm:$0xff]
    %v930 = vld [vmem:[%s926 + $0x18] sm:$0xff]
    %v931 = vld [vmem:[%s926 + $0x20] sm:$0xff]
    %v932 = vld [vmem:[%s926 + $0x28] sm:$0xff]
    %v933 = vld [vmem:[%s926 + $0x30] sm:$0xff]
    %v934 = vld [vmem:[%s926 + $0x38] sm:$0xff]
    %v935 = vld [vmem:[%s926 + $0x40] sm:$0xff]
    %v936 = vld [vmem:[%s926 + $0x48] sm:$0xff]
    %v937 = vld [vmem:[%s926 + $0x50] sm:$0xff]
    %v938 = vld [vmem:[%s926 + $0x58] sm:$0xff]
    %v939 = vld [vmem:[%s926 + $0x60] sm:$0xff]
    %v940 = vld [vmem:[%s926 + $0x68] sm:$0xff]
    %v941 = vld [vmem:[%s926 + $0x70] sm:$0xff]
    %v942 = vld [vmem:[%s926 + $0x78] sm:$0xff]
    %943 = vmatprep.subr.mxu0 0.0
    %944 = vmatpush1.msra.mxu0 %v927
    %945 = vmatprep.subr.mxu0 0.0
    %946 = vmatpush1.msra.mxu0 %v928
    %947 = vmatprep.subr.mxu0 0.0
    %948 = vmatpush1.msra.mxu0 %v929
    %949 = vmatprep.subr.mxu0 0.0
    %950 = vmatpush1.msra.mxu0 %v930
    %951 = vmatprep.subr.mxu0 0.0
    %952 = vmatpush1.msra.mxu0 %v931
    %953 = vmatprep.subr.mxu0 0.0
    %954 = vmatpush1.msra.mxu0 %v932
    %955 = vmatprep.subr.mxu0 0.0
    %956 = vmatpush1.msra.mxu0 %v933
    %957 = vmatprep.subr.mxu0 0.0
    %958 = vmatpush1.msra.mxu0 %v934
    %959 = vmatprep.subr.mxu0 0.0
    %960 = vmatpush1.msra.mxu0 %v935
    %961 = vmatprep.subr.mxu0 0.0
    %962 = vmatpush1.msra.mxu0 %v936
    %963 = vmatprep.subr.mxu0 0.0
    %964 = vmatpush1.msra.mxu0 %v937
    %965 = vmatprep.subr.mxu0 0.0
    %966 = vmatpush1.msra.mxu0 %v938
    %967 = vmatprep.subr.mxu0 0.0
    %968 = vmatpush1.msra.mxu0 %v939
    %969 = vmatprep.subr.mxu0 0.0
    %970 = vmatpush1.msra.mxu0 %v940
    %971 = vmatprep.subr.mxu0 0.0
    %972 = vmatpush1.msra.mxu0 %v941
    %973 = vmatprep.subr.mxu0 0.0
    %974 = vmatpush1.msra.mxu0 %v942
    %975 = vmatprep.subr.mxu0 0.0
    %976 = vmatpush1.msra.mxu0 0.0
    %977 = vmatprep.subr.mxu0 0.0
    %978 = vmatpush1.msra.mxu0 0.0
    %979 = vmatprep.subr.mxu0 0.0
    %980 = vmatpush1.msra.mxu0 0.0
    %981 = vmatprep.subr.mxu0 0.0
    %982 = vmatpush1.msra.mxu0 0.0
    %983 = vmatprep.subr.mxu0 0.0
    %984 = vmatpush1.msra.mxu0 0.0
    %985 = vmatprep.subr.mxu0 0.0
    %986 = vmatpush1.msra.mxu0 0.0
    %987 = vmatprep.subr.mxu0 0.0
    %988 = vmatpush1.msra.mxu0 0.0
    %989 = vmatprep.subr.mxu0 0.0
    %990 = vmatpush1.msra.mxu0 0.0
    %991 = vmatprep.subr.mxu0 0.0
    %992 = vmatpush1.msra.mxu0 0.0
    %993 = vmatprep.subr.mxu0 0.0
    %994 = vmatpush1.msra.mxu0 0.0
    %995 = vmatprep.subr.mxu0 0.0
    %996 = vmatpush1.msra.mxu0 0.0
    %997 = vmatprep.subr.mxu0 0.0
    %998 = vmatpush1.msra.mxu0 0.0
    %999 = vmatprep.subr.mxu0 0.0
    %1000 = vmatpush1.msra.mxu0 0.0
    %1001 = vmatprep.subr.mxu0 0.0
    %1002 = vmatpush1.msra.mxu0 0.0
    %1003 = vmatprep.subr.mxu0 0.0
    %1004 = vmatpush1.msra.mxu0 0.0
    %1005 = vmatprep.subr.mxu0 0.0
    %1006 = vmatpush1.msra.mxu0 0.0
    %1007 = vmatprep.mubr.f32.mxu0 0.0
    %1008 = vmatmul.mubr.f32.gmra.mrb[0].mxu0 %v816
    %v1009 = vpop.f32.mrb[0].mxu0
    %v1010 = vadd.f32 0.0, %v1009
    %v1011 = vpop.f32.mrb[0].mxu0
    %1012 = vmatprep.mubr.f32.mxu0 0.0
    %1013 = vmatmul.mubr.f32.gmra.mrb[0].mxu0 %v817
    %v1014 = vpop.f32.mrb[0].mxu0
    %v1015 = vadd.f32 0.0, %v1014
    %v1016 = vpop.f32.mrb[0].mxu0
    %1017 = vdwg.mxu0
    %v1018 = vrot.slane %v901, 7
    %v1019 = vrot.slane %v906, 7
    %v1020 = vsel %vm397, %v1018, %v1019
    %v1021 = vsel %vm397, %v1019, %v1018
    %v1022 = vsel %vm191, %v1021, 0.0
    %v1023 = vsel %vm192, %v1020, 0.0
    %v1024 = vrot.slane %v1010, 1
    %v1025 = vrot.slane %v1015, 1
    %v1026 = vsel %vm404, %v1024, %v1025
    %v1027 = vsel %vm404, %v1025, %v1024
    %v1028 = vsel %vm193, %v1026, 0.0
    %v1029 = vsel %vm194, %v1027, 0.0
    %1030 = vmatprep.subr.mxu0 0.0
    %1031 = vmatpush1.msra.mxu0 %v910
    %1032 = vmatprep.subr.mxu0 0.0
    %1033 = vmatpush1.msra.mxu0 %v911
    %1034 = vmatprep.subr.mxu0 0.0
    %1035 = vmatpush1.msra.mxu0 %v912
    %1036 = vmatprep.subr.mxu0 0.0
    %1037 = vmatpush1.msra.mxu0 %v913
    %1038 = vmatprep.subr.mxu0 0.0
    %1039 = vmatpush1.msra.mxu0 %v914
    %1040 = vmatprep.subr.mxu0 0.0
    %1041 = vmatpush1.msra.mxu0 %v915
    %1042 = vmatprep.subr.mxu0 0.0
    %1043 = vmatpush1.msra.mxu0 %v916
    %1044 = vmatprep.subr.mxu0 0.0
    %1045 = vmatpush1.msra.mxu0 %v917
    %1046 = vmatprep.subr.mxu0 0.0
    %1047 = vmatpush1.msra.mxu0 %v918
    %1048 = vmatprep.subr.mxu0 0.0
    %1049 = vmatpush1.msra.mxu0 %v919
    %1050 = vmatprep.subr.mxu0 0.0
    %1051 = vmatpush1.msra.mxu0 %v920
    %1052 = vmatprep.subr.mxu0 0.0
    %1053 = vmatpush1.msra.mxu0 %v921
    %1054 = vmatprep.subr.mxu0 0.0
    %1055 = vmatpush1.msra.mxu0 %v922
    %1056 = vmatprep.subr.mxu0 0.0
    %1057 = vmatpush1.msra.mxu0 %v923
    %1058 = vmatprep.subr.mxu0 0.0
    %1059 = vmatpush1.msra.mxu0 %v924
    %1060 = vmatprep.subr.mxu0 0.0
    %1061 = vmatpush1.msra.mxu0 %v925
    %1062 = vmatprep.subr.mxu0 0.0
    %1063 = vmatpush1.msra.mxu0 0.0
    %1064 = vmatprep.subr.mxu0 0.0
    %1065 = vmatpush1.msra.mxu0 0.0
    %1066 = vmatprep.subr.mxu0 0.0
    %1067 = vmatpush1.msra.mxu0 0.0
    %1068 = vmatprep.subr.mxu0 0.0
    %1069 = vmatpush1.msra.mxu0 0.0
    %1070 = vmatprep.subr.mxu0 0.0
    %1071 = vmatpush1.msra.mxu0 0.0
    %1072 = vmatprep.subr.mxu0 0.0
    %1073 = vmatpush1.msra.mxu0 0.0
    %1074 = vmatprep.subr.mxu0 0.0
    %1075 = vmatpush1.msra.mxu0 0.0
    %1076 = vmatprep.subr.mxu0 0.0
    %1077 = vmatpush1.msra.mxu0 0.0
    %1078 = vmatprep.subr.mxu0 0.0
    %1079 = vmatpush1.msra.mxu0 0.0
    %1080 = vmatprep.subr.mxu0 0.0
    %1081 = vmatpush1.msra.mxu0 0.0
    %1082 = vmatprep.subr.mxu0 0.0
    %1083 = vmatpush1.msra.mxu0 0.0
    %1084 = vmatprep.subr.mxu0 0.0
    %1085 = vmatpush1.msra.mxu0 0.0
    %1086 = vmatprep.subr.mxu0 0.0
    %1087 = vmatpush1.msra.mxu0 0.0
    %1088 = vmatprep.subr.mxu0 0.0
    %1089 = vmatpush1.msra.mxu0 0.0
    %1090 = vmatprep.subr.mxu0 0.0
    %1091 = vmatpush1.msra.mxu0 0.0
    %1092 = vmatprep.subr.mxu0 0.0
    %1093 = vmatpush1.msra.mxu0 0.0
    %1094 = vmatprep.mubr.f32.mxu0 0.0
    %1095 = vmatmul.mubr.f32.gmra.mrb[0].mxu0 %v816
    %v1096 = vpop.f32.mrb[0].mxu0
    %v1097 = vadd.f32 %v1022, %v1096
    %v1098 = vpop.f32.mrb[0].mxu0
    %1099 = vmatprep.mubr.f32.mxu0 0.0
    %1100 = vmatmul.mubr.f32.gmra.mrb[0].mxu0 %v817
    %v1101 = vpop.f32.mrb[0].mxu0
    %v1102 = vadd.f32 %v1023, %v1101
    %v1103 = vpop.f32.mrb[0].mxu0
    %1104 = vdwg.mxu0
    %v1105 = vadd.f32 %v1097, %v1028
    %v1106 = vadd.f32 %v1102, %v1029
    %v1107 = vld [vmem:[#allocation14] sm:$0x1]
    %v1108 = vld [vmem:[#allocation16] sm:$0x1]
    %v1109 = vadd.f32 %v1105, %v1106
    %v1110 = vrot.slane %v1109, 4
    %v1111 = vadd.f32 %v1109, %v1110
    %v1112 = vrot.slane %v1111, 2
    %v1113 = vadd.f32 %v1111, %v1112
    %v1114 = vrot.slane %v1113, 1
    %v1115 = vadd.f32 %v1113, %v1114
    %1116 = vmatprep.subr.mxu0 0.0
    %1117 = vmatpush1.msra.mxu0 %v147
    %1118 = vmatprep.subr.mxu0 0.0
    %1119 = vmatpush1.msra.mxu0 %v148
    %1120 = vmatprep.subr.mxu0 0.0
    %1121 = vmatpush1.msra.mxu0 %v149
    %1122 = vmatprep.subr.mxu0 0.0
    %1123 = vmatpush1.msra.mxu0 %v150
    %1124 = vmatprep.subr.mxu0 0.0
    %1125 = vmatpush1.msra.mxu0 %v151
    %1126 = vmatprep.subr.mxu0 0.0
    %1127 = vmatpush1.msra.mxu0 %v152
    %1128 = vmatprep.subr.mxu0 0.0
    %1129 = vmatpush1.msra.mxu0 %v153
    %1130 = vmatprep.subr.mxu0 0.0
    %1131 = vmatpush1.msra.mxu0 %v154
    %1132 = vmatprep.subr.mxu0 0.0
    %1133 = vmatpush1.msra.mxu0 %v155
    %1134 = vmatprep.subr.mxu0 0.0
    %1135 = vmatpush1.msra.mxu0 %v156
    %1136 = vmatprep.subr.mxu0 0.0
    %1137 = vmatpush1.msra.mxu0 %v157
    %1138 = vmatprep.subr.mxu0 0.0
    %1139 = vmatpush1.msra.mxu0 %v158
    %1140 = vmatprep.subr.mxu0 0.0
    %1141 = vmatpush1.msra.mxu0 %v159
    %1142 = vmatprep.subr.mxu0 0.0
    %1143 = vmatpush1.msra.mxu0 %v160
    %1144 = vmatprep.subr.mxu0 0.0
    %1145 = vmatpush1.msra.mxu0 %v161
    %1146 = vmatprep.subr.mxu0 0.0
    %1147 = vmatpush1.msra.mxu0 %v162
    %1148 = vmatprep.subr.mxu0 0.0
    %1149 = vmatpush1.msra.mxu0 0.0
    %1150 = vmatprep.subr.mxu0 0.0
    %1151 = vmatpush1.msra.mxu0 0.0
    %1152 = vmatprep.subr.mxu0 0.0
    %1153 = vmatpush1.msra.mxu0 0.0
    %1154 = vmatprep.subr.mxu0 0.0
    %1155 = vmatpush1.msra.mxu0 0.0
    %1156 = vmatprep.subr.mxu0 0.0
    %1157 = vmatpush1.msra.mxu0 0.0
    %1158 = vmatprep.subr.mxu0 0.0
    %1159 = vmatpush1.msra.mxu0 0.0
    %1160 = vmatprep.subr.mxu0 0.0
    %1161 = vmatpush1.msra.mxu0 0.0
    %1162 = vmatprep.subr.mxu0 0.0
    %1163 = vmatpush1.msra.mxu0 0.0
    %1164 = vmatprep.subr.mxu0 0.0
    %1165 = vmatpush1.msra.mxu0 0.0
    %1166 = vmatprep.subr.mxu0 0.0
    %1167 = vmatpush1.msra.mxu0 0.0
    %1168 = vmatprep.subr.mxu0 0.0
    %1169 = vmatpush1.msra.mxu0 0.0
    %1170 = vmatprep.subr.mxu0 0.0
    %1171 = vmatpush1.msra.mxu0 0.0
    %1172 = vmatprep.subr.mxu0 0.0
    %1173 = vmatpush1.msra.mxu0 0.0
    %1174 = vmatprep.subr.mxu0 0.0
    %1175 = vmatpush1.msra.mxu0 0.0
    %1176 = vmatprep.subr.mxu0 0.0
    %1177 = vmatpush1.msra.mxu0 0.0
    %1178 = vmatprep.subr.mxu0 0.0
    %1179 = vmatpush1.msra.mxu0 0.0
    %1180 = vmatprep.mubr.f32.mxu0 0.0
    %1181 = vmatmul.mubr.f32.gmra.mrb[0].mxu0 %v1115
    %v1182 = vpop.f32.mrb[0].mxu0
    %v1183 = vadd.f32 0.0, %v1182
    %v1184 = vpop.f32.mrb[0].mxu0
    %1185 = vdwg.mxu0
    %v1186 = vmul.f32 %v1183, 0.00390625
    %v1188 = vsel %vm566, %v1186, 0
    %1190 = vmatprep.subr.mxu0 0.0
    %1191 = vmatpush1.msra.mxu0 %v163
    %1192 = vmatprep.subr.mxu0 0.0
    %1193 = vmatpush1.msra.mxu0 0.0
    %1194 = vmatprep.subr.mxu0 0.0
    %1195 = vmatpush1.msra.mxu0 0.0
    %1196 = vmatprep.subr.mxu0 0.0
    %1197 = vmatpush1.msra.mxu0 0.0
    %1198 = vmatprep.subr.mxu0 0.0
    %1199 = vmatpush1.msra.mxu0 0.0
    %1200 = vmatprep.subr.mxu0 0.0
    %1201 = vmatpush1.msra.mxu0 0.0
    %1202 = vmatprep.subr.mxu0 0.0
    %1203 = vmatpush1.msra.mxu0 0.0
    %1204 = vmatprep.subr.mxu0 0.0
    %1205 = vmatpush1.msra.mxu0 0.0
    %1206 = vmatprep.subr.mxu0 0.0
    %1207 = vmatpush1.msra.mxu0 0.0
    %1208 = vmatprep.subr.mxu0 0.0
    %1209 = vmatpush1.msra.mxu0 0.0
    %1210 = vmatprep.subr.mxu0 0.0
    %1211 = vmatpush1.msra.mxu0 0.0
    %1212 = vmatprep.subr.mxu0 0.0
    %1213 = vmatpush1.msra.mxu0 0.0
    %1214 = vmatprep.subr.mxu0 0.0
    %1215 = vmatpush1.msra.mxu0 0.0
    %1216 = vmatprep.subr.mxu0 0.0
    %1217 = vmatpush1.msra.mxu0 0.0
    %1218 = vmatprep.subr.mxu0 0.0
    %1219 = vmatpush1.msra.mxu0 0.0
    %1220 = vmatprep.subr.mxu0 0.0
    %1221 = vmatpush1.msra.mxu0 0.0
    %1222 = vmatprep.subr.mxu0 0.0
    %1223 = vmatpush1.msra.mxu0 0.0
    %1224 = vmatprep.subr.mxu0 0.0
    %1225 = vmatpush1.msra.mxu0 0.0
    %1226 = vmatprep.subr.mxu0 0.0
    %1227 = vmatpush1.msra.mxu0 0.0
    %1228 = vmatprep.subr.mxu0 0.0
    %1229 = vmatpush1.msra.mxu0 0.0
    %1230 = vmatprep.subr.mxu0 0.0
    %1231 = vmatpush1.msra.mxu0 0.0
    %1232 = vmatprep.subr.mxu0 0.0
    %1233 = vmatpush1.msra.mxu0 0.0
    %1234 = vmatprep.subr.mxu0 0.0
    %1235 = vmatpush1.msra.mxu0 0.0
    %1236 = vmatprep.subr.mxu0 0.0
    %1237 = vmatpush1.msra.mxu0 0.0
    %1238 = vmatprep.subr.mxu0 0.0
    %1239 = vmatpush1.msra.mxu0 0.0
    %1240 = vmatprep.subr.mxu0 0.0
    %1241 = vmatpush1.msra.mxu0 0.0
    %1242 = vmatprep.subr.mxu0 0.0
    %1243 = vmatpush1.msra.mxu0 0.0
    %1244 = vmatprep.subr.mxu0 0.0
    %1245 = vmatpush1.msra.mxu0 0.0
    %1246 = vmatprep.subr.mxu0 0.0
    %1247 = vmatpush1.msra.mxu0 0.0
    %1248 = vmatprep.subr.mxu0 0.0
    %1249 = vmatpush1.msra.mxu0 0.0
    %1250 = vmatprep.subr.mxu0 0.0
    %1251 = vmatpush1.msra.mxu0 0.0
    %1252 = vmatprep.subr.mxu0 0.0
    %1253 = vmatpush1.msra.mxu0 0.0
    %1254 = vmatprep.mubr.f32.mxu0 0.0
    %1255 = vmatmul.mubr.f32.gmra.mrb[0].mxu0 %v1188
    %v1256 = vpop.f32.mrb[0].mxu0
    %v1257 = vadd.f32 0.0, %v1256
    %v1258 = vpop.f32.mrb[0].mxu0
    %1259 = vdwg.mxu0
    %v1260 = vlaneseq
    %v1261 = vshrl.u32 %v1260, 7
    %v1262 = vsub.s32 0, %v1261
    %v1263 = vrot.slane %v1257, %v1262
    %v1264 = vsub.f32 %v1105, %v1263
    %v1265 = vsub.f32 %v1106, %v1263
    %v1266 = vmul.f32 %v1264, %v1264
    %v1267 = vmul.f32 %v1265, %v1265
    %v1268 = vadd.f32 %v1266, %v1267
    %v1269 = vrot.slane %v1268, 4
    %v1270 = vadd.f32 %v1268, %v1269
    %v1271 = vrot.slane %v1270, 2
    %v1272 = vadd.f32 %v1270, %v1271
    %v1273 = vrot.slane %v1272, 1
    %v1274 = vadd.f32 %v1272, %v1273
    %1275 = vmatprep.subr.mxu0 0.0
    %1276 = vmatpush1.msra.mxu0 %v147
    %1277 = vmatprep.subr.mxu0 0.0
    %1278 = vmatpush1.msra.mxu0 %v148
    %1279 = vmatprep.subr.mxu0 0.0
    %1280 = vmatpush1.msra.mxu0 %v149
    %1281 = vmatprep.subr.mxu0 0.0
    %1282 = vmatpush1.msra.mxu0 %v150
    %1283 = vmatprep.subr.mxu0 0.0
    %1284 = vmatpush1.msra.mxu0 %v151
    %1285 = vmatprep.subr.mxu0 0.0
    %1286 = vmatpush1.msra.mxu0 %v152
    %1287 = vmatprep.subr.mxu0 0.0
    %1288 = vmatpush1.msra.mxu0 %v153
    %1289 = vmatprep.subr.mxu0 0.0
    %1290 = vmatpush1.msra.mxu0 %v154
    %1291 = vmatprep.subr.mxu0 0.0
    %1292 = vmatpush1.msra.mxu0 %v155
    %1293 = vmatprep.subr.mxu0 0.0
    %1294 = vmatpush1.msra.mxu0 %v156
    %1295 = vmatprep.subr.mxu0 0.0
    %1296 = vmatpush1.msra.mxu0 %v157
    %1297 = vmatprep.subr.mxu0 0.0
    %1298 = vmatpush1.msra.mxu0 %v158
    %1299 = vmatprep.subr.mxu0 0.0
    %1300 = vmatpush1.msra.mxu0 %v159
    %1301 = vmatprep.subr.mxu0 0.0
    %1302 = vmatpush1.msra.mxu0 %v160
    %1303 = vmatprep.subr.mxu0 0.0
    %1304 = vmatpush1.msra.mxu0 %v161
    %1305 = vmatprep.subr.mxu0 0.0
    %1306 = vmatpush1.msra.mxu0 %v162
    %1307 = vmatprep.subr.mxu0 0.0
    %1308 = vmatpush1.msra.mxu0 0.0
    %1309 = vmatprep.subr.mxu0 0.0
    %1310 = vmatpush1.msra.mxu0 0.0
    %1311 = vmatprep.subr.mxu0 0.0
    %1312 = vmatpush1.msra.mxu0 0.0
    %1313 = vmatprep.subr.mxu0 0.0
    %1314 = vmatpush1.msra.mxu0 0.0
    %1315 = vmatprep.subr.mxu0 0.0
    %1316 = vmatpush1.msra.mxu0 0.0
    %1317 = vmatprep.subr.mxu0 0.0
    %1318 = vmatpush1.msra.mxu0 0.0
    %1319 = vmatprep.subr.mxu0 0.0
    %1320 = vmatpush1.msra.mxu0 0.0
    %1321 = vmatprep.subr.mxu0 0.0
    %1322 = vmatpush1.msra.mxu0 0.0
    %1323 = vmatprep.subr.mxu0 0.0
    %1324 = vmatpush1.msra.mxu0 0.0
    %1325 = vmatprep.subr.mxu0 0.0
    %1326 = vmatpush1.msra.mxu0 0.0
    %1327 = vmatprep.subr.mxu0 0.0
    %1328 = vmatpush1.msra.mxu0 0.0
    %1329 = vmatprep.subr.mxu0 0.0
    %1330 = vmatpush1.msra.mxu0 0.0
    %1331 = vmatprep.subr.mxu0 0.0
    %1332 = vmatpush1.msra.mxu0 0.0
    %1333 = vmatprep.subr.mxu0 0.0
    %1334 = vmatpush1.msra.mxu0 0.0
    %1335 = vmatprep.subr.mxu0 0.0
    %1336 = vmatpush1.msra.mxu0 0.0
    %1337 = vmatprep.subr.mxu0 0.0
    %1338 = vmatpush1.msra.mxu0 0.0
    %1339 = vmatprep.mubr.f32.mxu0 0.0
    %1340 = vmatmul.mubr.f32.gmra.mrb[0].mxu0 %v1274
    %v1341 = vpop.f32.mrb[0].mxu0
    %v1342 = vadd.f32 0.0, %v1341
    %v1343 = vpop.f32.mrb[0].mxu0
    %1344 = vdwg.mxu0
    %v1345 = vmul.f32 %v1342, 0.00390625
    %v1346 = vadd.f32 %v1345, 1e-05
    %v1347 = vrsqrt.pop %v1346
    %v1348 = vmul.f32 %v1107, %v1347
    %v1350 = vsel %vm566, %v1348, 0
    %1352 = vmatprep.subr.mxu0 0.0
    %1353 = vmatpush1.msra.mxu0 %v163
    %1354 = vmatprep.subr.mxu0 0.0
    %1355 = vmatpush1.msra.mxu0 0.0
    %1356 = vmatprep.subr.mxu0 0.0
    %1357 = vmatpush1.msra.mxu0 0.0
    %1358 = vmatprep.subr.mxu0 0.0
    %1359 = vmatpush1.msra.mxu0 0.0
    %1360 = vmatprep.subr.mxu0 0.0
    %1361 = vmatpush1.msra.mxu0 0.0
    %1362 = vmatprep.subr.mxu0 0.0
    %1363 = vmatpush1.msra.mxu0 0.0
    %1364 = vmatprep.subr.mxu0 0.0
    %1365 = vmatpush1.msra.mxu0 0.0
    %1366 = vmatprep.subr.mxu0 0.0
    %1367 = vmatpush1.msra.mxu0 0.0
    %1368 = vmatprep.subr.mxu0 0.0
    %1369 = vmatpush1.msra.mxu0 0.0
    %1370 = vmatprep.subr.mxu0 0.0
    %1371 = vmatpush1.msra.mxu0 0.0
    %1372 = vmatprep.subr.mxu0 0.0
    %1373 = vmatpush1.msra.mxu0 0.0
    %1374 = vmatprep.subr.mxu0 0.0
    %1375 = vmatpush1.msra.mxu0 0.0
    %1376 = vmatprep.subr.mxu0 0.0
    %1377 = vmatpush1.msra.mxu0 0.0
    %1378 = vmatprep.subr.mxu0 0.0
    %1379 = vmatpush1.msra.mxu0 0.0
    %1380 = vmatprep.subr.mxu0 0.0
    %1381 = vmatpush1.msra.mxu0 0.0
    %1382 = vmatprep.subr.mxu0 0.0
    %1383 = vmatpush1.msra.mxu0 0.0
    %1384 = vmatprep.subr.mxu0 0.0
    %1385 = vmatpush1.msra.mxu0 0.0
    %1386 = vmatprep.subr.mxu0 0.0
    %1387 = vmatpush1.msra.mxu0 0.0
    %1388 = vmatprep.subr.mxu0 0.0
    %1389 = vmatpush1.msra.mxu0 0.0
    %1390 = vmatprep.subr.mxu0 0.0
    %1391 = vmatpush1.msra.mxu0 0.0
    %1392 = vmatprep.subr.mxu0 0.0
    %1393 = vmatpush1.msra.mxu0 0.0
    %1394 = vmatprep.subr.mxu0 0.0
    %1395 = vmatpush1.msra.mxu0 0.0
    %1396 = vmatprep.subr.mxu0 0.0
    %1397 = vmatpush1.msra.mxu0 0.0
    %1398 = vmatprep.subr.mxu0 0.0
    %1399 = vmatpush1.msra.mxu0 0.0
    %1400 = vmatprep.subr.mxu0 0.0
    %1401 = vmatpush1.msra.mxu0 0.0
    %1402 = vmatprep.subr.mxu0 0.0
    %1403 = vmatpush1.msra.mxu0 0.0
    %1404 = vmatprep.subr.mxu0 0.0
    %1405 = vmatpush1.msra.mxu0 0.0
    %1406 = vmatprep.subr.mxu0 0.0
    %1407 = vmatpush1.msra.mxu0 0.0
    %1408 = vmatprep.subr.mxu0 0.0
    %1409 = vmatpush1.msra.mxu0 0.0
    %1410 = vmatprep.subr.mxu0 0.0
    %1411 = vmatpush1.msra.mxu0 0.0
    %1412 = vmatprep.subr.mxu0 0.0
    %1413 = vmatpush1.msra.mxu0 0.0
    %1414 = vmatprep.subr.mxu0 0.0
    %1415 = vmatpush1.msra.mxu0 0.0
    %1416 = vmatprep.mubr.f32.mxu0 0.0
    %1417 = vmatmul.mubr.f32.gmra.mrb[0].mxu0 %v1350
    %v1418 = vpop.f32.mrb[0].mxu0
    %v1419 = vadd.f32 0.0, %v1418
    %v1420 = vpop.f32.mrb[0].mxu0
    %1421 = vdwg.mxu0
    %v1422 = vlaneseq
    %v1423 = vshrl.u32 %v1422, 7
    %v1424 = vsub.s32 0, %v1423
    %v1425 = vrot.slane %v1419, %v1424
    %v1426 = vmul.f32 %v1264, %v1425
    %v1427 = vmul.f32 %v1265, %v1425
    %v1429 = vlaneseq
    %v1430 = vshrl.u32 %v1429, 7
    %v1431 = vsub.s32 0, %v1430
    %v1432 = vrot.slane %v1108, %v1431
    %v1434 = vadd.f32 %v1426, %v1432
    %v1435 = vadd.f32 %v1427, %v1432
    %v1436 = vadd.f32 %v145, %v1434
    %v1437 = vadd.f32 %v146, %v1435
    %1438 = vst [vmem:[#allocation17] sm:$0xff] %v1436
    %1439 = vst [vmem:[#allocation17 + $0x8] sm:$0xff] %v1437
    // Predicated region
    $region74: #{tpu_custom_call.1} parent=1 // pred_check
      _
    $region75: #{tpu_custom_call.1} parent=1 // pred_check_branch
      %1441 = sbr.rel (0) target = $region77
    $region76: #{tpu_custom_call.1} parent=1 // pred_region
      %s1443 = ssub.s32 256, 256
      %1444 = vsyncadd [#allocation4], %s1443
      %s1445 = sshll.u32 [#allocation17], 4
      %s1446 = int_to_ptr.vmem [resolvable:$true] %s1445
      %1451 = dma.vmem_to_hbm [thread:$0]  %s1446, 256, %s9, [#allocation4], 128, 128, 8
    $region77: #{tpu_custom_call.1} parent=1 // pred_fallthru
      _
    // Predicated region
    $region78: #{tpu_custom_call.1} parent=1 // pred_check
      _
    $region79: #{tpu_custom_call.1} parent=1 // pred_check_branch
      %1453 = sbr.rel (0) target = $region81
    $region80: #{tpu_custom_call.1} parent=1 // pred_region
      %1454 = dma.done [#allocation4], 256
    $region81: #{tpu_custom_call.1} parent=1 // pred_fallthru
      _
    %1455 = vsyncpa [#allocation3], 1
    %1456 = vsyncpa [#allocation6], 1
    %1457 = vsyncpa [#allocation9], 1
    %1458 = vsyncpa [#allocation12], 1
    %1459 = vsyncpa [#allocation15], 1
    %1460 = vsyncpa [#allocation4], 1

</llo_original>
